<compile_context>
chip_gen: v7x
topology: tpu7x:2x2x1
jax: 0.10.0
libtpu: 0.0.40
codegen_flags: <defaults>
</compile_context>

<pallas_src>
from typing import NamedTuple

import jax
import jax.numpy as jnp
from jax.experimental import pallas as pl
from jax.experimental.pallas import tpu as pltpu

_HIDDEN = 64       # torch hidden width
_HIDDEN_PAD = 128  # padded to full lane width


# ----------------------------------------------------------------------------
# Pallas kernel: fused Linear(D, H) -> ReLU -> Linear(H, 1) for one row tile.
# ----------------------------------------------------------------------------
def _signal_net_kernel(x_ref, w1_ref, b1_ref, w2_ref, b2_ref, o_ref):
    # x_ref : (TM, D)     w1_ref: (D, Hp)   b1_ref: (1, Hp)
    # w2_ref: (1, Hp)     b2_ref: (1,)  SMEM scalar
    # o_ref : (1, 1, TM)  lane-dense logits for this row tile
    x = x_ref[...]
    h = jnp.dot(x, w1_ref[...], preferred_element_type=jnp.float32)
    h = jnp.maximum(h + b1_ref[...], 0.0)  # ReLU, (TM, Hp)

    # Second layer: contract the hidden (lane) axis of both operands
    # ('qd,kd->qk' with q=1).  This yields a lane-dense (1, TM) row instead of
    # a (TM, 1) column (no masked narrow stores, no N=1 MXU matmul).
    logits = jax.lax.dot_general(
        w2_ref[...], h,
        dimension_numbers=(((1,), (1,)), ((), ())),
        preferred_element_type=jnp.float32,
    )  # (1, TM)
    logits = logits + b2_ref[0]
    o_ref[...] = logits[None].astype(o_ref.dtype)  # (1, 1, TM)


def _choose_tile_m(d):
    # Keep 2 double-buffered (TM, D) f32 x-tiles comfortably under the default
    # scoped VMEM limit (v7x: 32 MiB scoped / 64 MiB physical per TC).
    budget_bytes = 20 * 1024 * 1024
    tm = budget_bytes // (2 * 4 * max(int(d), 1))
    tm = (tm // 128) * 128
    return max(128, min(1024, tm))


def signal_net_logits(x2d, w1, b1, w2_row, b2):
    """x2d: (M, D) -> (M,) logits via the fused, row-tiled MLP kernel."""
    m, d = x2d.shape
    hp = w1.shape[1]
    tm = _choose_tile_m(d)
    num_tiles = pl.cdiv(m, tm)
    m_pad = num_tiles * tm
    if m_pad != m:
        # Ragged tail: pad rows with zeros; padded logits are sliced off below.
        x2d = jnp.pad(x2d, ((0, m_pad - m), (0, 0)))

    out = pl.pallas_call(
        _signal_net_kernel,
        out_shape=jax.ShapeDtypeStruct((num_tiles, 1, tm), jnp.float32),
        grid=(num_tiles,),
        in_specs=[
            pl.BlockSpec((tm, d), lambda i: (i, 0)),            # x: streamed row tiles
            pl.BlockSpec((d, hp), lambda i: (0, 0)),            # W1: resident
            pl.BlockSpec((1, hp), lambda i: (0, 0)),            # b1: resident
            pl.BlockSpec((1, hp), lambda i: (0, 0)),            # W2 row: resident
            pl.BlockSpec(memory_space=pltpu.MemorySpace.SMEM),  # b2: SMEM scalar
        ],
        out_specs=pl.BlockSpec((1, 1, tm), lambda i: (i, 0, 0)),
        compiler_params=pltpu.CompilerParams(
            dimension_semantics=("parallel",),  # shard row tiles across TCs (v7x)
        ),
        cost_estimate=pl.CostEstimate(
            flops=2 * m_pad * d * hp + 2 * m_pad * hp,
            transcendentals=0,
            bytes_accessed=(m_pad * d + d * hp + 2 * hp + 1 + m_pad) * 4,
        ),
    )(x2d, w1, b1, w2_row, b2)

    return out.reshape(m_pad)[:m]  # flat (M,) logits


# ----------------------------------------------------------------------------
# Lightweight RelaxedBernoulli container (forward only constructs it).
# ----------------------------------------------------------------------------
class RelaxedBernoulli(NamedTuple):
    temperature: float
    logits: jnp.ndarray
    # TODO(synk): rsample/log_prob are not exercised by the module's forward;
    # they would be plain-JAX elementwise ops if needed.


class RelaxedBernoulliDistributionPallas:
    """JAX/Pallas port of RelaxedBernoulliDistribution."""

    def __init__(self, dmodel, temperature=0.1, key=None):
        self.temperature = float(temperature)
        if key is None:
            key = jax.random.PRNGKey(0)
        k1, k2, k3, k4 = jax.random.split(key, 4)
        # Deterministic init mimicking nn.Linear default (uniform +-1/sqrt(fan_in)).
        bound1 = 1.0 / jnp.sqrt(dmodel)
        bound2 = 1.0 / jnp.sqrt(_HIDDEN)
        w1 = jax.random.uniform(k1, (dmodel, _HIDDEN), jnp.float32, -bound1, bound1)
        b1 = jax.random.uniform(k2, (1, _HIDDEN), jnp.float32, -bound1, bound1)
        # Row form of nn.Linear(64, 1).weight (shape (1, 64)).
        w2 = jax.random.uniform(k3, (1, _HIDDEN), jnp.float32, -bound2, bound2)
        b2 = jax.random.uniform(k4, (1,), jnp.float32, -bound2, bound2)

        # Zero-pad the hidden dim to full lane width (128); padded W1 columns,
        # b1 entries and W2 entries are exactly zero so ReLU(0)*0 contributes
        # nothing to the logit.
        pad = _HIDDEN_PAD - _HIDDEN
        self.w1 = jnp.pad(w1, ((0, 0), (0, pad)))
        self.b1 = jnp.pad(b1, ((0, 0), (0, pad)))
        self.w2 = jnp.pad(w2, ((0, 0), (0, pad)))
        self.b2 = b2

    def __call__(self, representation):
        # representation: (..., dmodel) -> logits (..., 1)
        lead_shape = representation.shape[:-1]
        d = representation.shape[-1]
        x2d = representation.reshape(-1, d).astype(jnp.float32)
        logits_flat = signal_net_logits(x2d, self.w1, self.b1, self.w2, self.b2)
        logits = logits_flat.reshape(*lead_shape, 1)
        return RelaxedBernoulli(temperature=self.temperature, logits=logits)


if __name__ == "__main__":
    # Small shapes: batch=2, seq=8, dmodel=32
    B, S, D = 2, 8, 32
    key = jax.random.PRNGKey(0)
    k_in, k_params = jax.random.split(key)
    representation = jax.random.normal(k_in, (B, S, D), dtype=jnp.float32)

    module = RelaxedBernoulliDistributionPallas(dmodel=D, temperature=0.1, key=k_params)
    q_z = module(representation)
    logits = jax.block_until_ready(q_z.logits)

    # Plain-JAX reference using the UNPADDED weights (slices of the padded
    # ones) — also validates that hidden-dim padding is exact.
    w1u = module.w1[:, :_HIDDEN]
    b1u = module.b1[:, :_HIDDEN]
    w2u = module.w2[:, :_HIDDEN]
    b2u = module.b2
    h_ref = jnp.maximum(representation.reshape(-1, D) @ w1u + b1u, 0.0)
    logits_ref = (h_ref @ w2u.T + b2u).reshape(B, S, 1)

    assert logits.shape == (B, S, 1)
    max_err = float(jnp.max(jnp.abs(logits - logits_ref)))
    assert jnp.allclose(logits, logits_ref, atol=1e-4, rtol=1e-4), max_err

    print("KERNEL_OK")
</pallas_src>

<mosaic_0001>
module attributes {stable_mosaic.version = 11 : i64} {
  func.func @_signal_net_kernel(%arg0: i32, %arg1: memref<1024x32xf32, #tpu.memory_space<vmem>>, %arg2: memref<32x128xf32, #tpu.memory_space<vmem>>, %arg3: memref<1x128xf32, #tpu.memory_space<vmem>>, %arg4: memref<1x128xf32, #tpu.memory_space<vmem>>, %arg5: memref<1xf32, #tpu.memory_space<smem>>, %arg6: memref<1x1x1024xf32, #tpu.memory_space<vmem>>) attributes {dimension_semantics = [#tpu.dimension_semantics<parallel>], iteration_bounds = array<i64: 1>, scalar_prefetch = 0 : i64, scratch_operands = 0 : i64, tpu.core_type = #tpu.core_type<tc>, window_params = [{transform_indices = @transform_0, window_bounds = array<i64: 1024, 32>}, {pipeline_mode = #tpu.pipeline_mode<synchronous>, transform_indices = @transform_1, window_bounds = array<i64: 32, 128>}, {pipeline_mode = #tpu.pipeline_mode<synchronous>, transform_indices = @transform_2, window_bounds = array<i64: 1, 128>}, {pipeline_mode = #tpu.pipeline_mode<synchronous>, transform_indices = @transform_3, window_bounds = array<i64: 1, 128>}, {transform_indices = @transform_4, window_bounds = array<i64: 1>}, {transform_indices = @transform_5, window_bounds = array<i64: 1, 1, 1024>}]} {
    %c0 = arith.constant 0 : index
    %c0_0 = arith.constant 0 : index
    %0 = vector.load %arg1[%c0, %c0_0] : memref<1024x32xf32, #tpu.memory_space<vmem>>, vector<1024x32xf32>
    %c0_1 = arith.constant 0 : index
    %c0_2 = arith.constant 0 : index
    %1 = vector.load %arg2[%c0_1, %c0_2] : memref<32x128xf32, #tpu.memory_space<vmem>>, vector<32x128xf32>
    %cst = arith.constant dense<0.000000e+00> : vector<1024x128xf32>
    %2 = tpu.matmul %0, %1, %cst {dimension_numbers = #tpu.dot_dimension_numbers<[1], [0], [0], [1], [0, 0, 1, 1], [], []>} : vector<1024x32xf32>, vector<32x128xf32>, vector<1024x128xf32> -> vector<1024x128xf32>
    %c0_3 = arith.constant 0 : index
    %c0_4 = arith.constant 0 : index
    %3 = vector.load %arg3[%c0_3, %c0_4] : memref<1x128xf32, #tpu.memory_space<vmem>>, vector<1x128xf32>
    %4 = vector.broadcast %3 : vector<1x128xf32> to vector<1024x128xf32>
    %5 = arith.addf %2, %4 : vector<1024x128xf32>
    %cst_5 = arith.constant 0.000000e+00 : f32
    %6 = vector.broadcast %cst_5 : f32 to vector<1024x128xf32>
    %7 = arith.maximumf %5, %6 : vector<1024x128xf32>
    %c0_6 = arith.constant 0 : index
    %c0_7 = arith.constant 0 : index
    %8 = vector.load %arg4[%c0_6, %c0_7] : memref<1x128xf32, #tpu.memory_space<vmem>>, vector<1x128xf32>
    %cst_8 = arith.constant dense<0.000000e+00> : vector<1x1024xf32>
    %9 = tpu.matmul %8, %7, %cst_8 {dimension_numbers = #tpu.dot_dimension_numbers<[1], [1], [0], [0], [0, 0, 1, 0], [], []>} : vector<1x128xf32>, vector<1024x128xf32>, vector<1x1024xf32> -> vector<1x1024xf32>
    %c0_9 = arith.constant 0 : index
    %10 = memref.load %arg5[%c0_9] : memref<1xf32, #tpu.memory_space<smem>>
    %11 = vector.broadcast %10 : f32 to vector<1x1024xf32>
    %12 = arith.addf %9, %11 : vector<1x1024xf32>
    %13 = vector.shape_cast %12 : vector<1x1024xf32> to vector<1x1x1024xf32>
    %c0_10 = arith.constant 0 : index
    %c0_11 = arith.constant 0 : index
    %c0_12 = arith.constant 0 : index
    %14 = vector.load %arg6[%c0_10, %c0_11, %c0_12] : memref<1x1x1024xf32, #tpu.memory_space<vmem>>, vector<1x1x1024xf32>
    tpu.vector_store %arg6[%c0_10, %c0_11, %c0_12], %13 {strides = array<i32>} : memref<1x1x1024xf32, #tpu.memory_space<vmem>>, vector<1x1x1024xf32>,
    return
  }
  func.func @transform_0(%arg0: i32) -> (i32, i32) {
    %c0_i32 = arith.constant 0 : i32
    %c0_i32_0 = arith.constant 0 : i32
    return %arg0, %c0_i32 : i32, i32
  }
  func.func @transform_1(%arg0: i32) -> (i32, i32) {
    %c0_i32 = arith.constant 0 : i32
    %c0_i32_0 = arith.constant 0 : i32
    %c0_i32_1 = arith.constant 0 : i32
    return %c0_i32, %c0_i32_0 : i32, i32
  }
  func.func @transform_2(%arg0: i32) -> (i32, i32) {
    %c0_i32 = arith.constant 0 : i32
    %c0_i32_0 = arith.constant 0 : i32
    %c0_i32_1 = arith.constant 0 : i32
    return %c0_i32, %c0_i32_0 : i32, i32
  }
  func.func @transform_3(%arg0: i32) -> (i32, i32) {
    %c0_i32 = arith.constant 0 : i32
    %c0_i32_0 = arith.constant 0 : i32
    %c0_i32_1 = arith.constant 0 : i32
    return %c0_i32, %c0_i32_0 : i32, i32
  }
  func.func @transform_4(%arg0: i32) -> i32 {
    %c0_i32 = arith.constant 0 : i32
    %c0_i32_0 = arith.constant 0 : i32
    return %c0_i32 : i32
  }
  func.func @transform_5(%arg0: i32) -> (i32, i32, i32) {
    %c0_i32 = arith.constant 0 : i32
    %c0_i32_0 = arith.constant 0 : i32
    %c0_i32_1 = arith.constant 0 : i32
    return %arg0, %c0_i32, %c0_i32_0 : i32, i32, i32
  }
}

</mosaic_0001>

<llo_original>
// kernel: tpu_custom_call.1
$region0: #{tpu_custom_call.1}
  #allocation0 [shape = 'u32[]', space=smem, size = 0x4, offset = 0x4, fixed_abs, tag = 'smem constant byte address 0x4 - core index']
  #allocation1 [shape = 'u32[144,128]{1,0:T(1,128)}', space=vmem, size = 0x12000, scoped, tag = 'internal scratch']
  #allocation2 [shape = 'f32[1]{0:T(128)S(6)}', space=smem, size = 0x200, scoped, tag = 'scoped memory for tpu_custom_call.1']
  %s0 = inlined_call_operand.vmem [shape: f32[1024,32], index: 0, kind: input, shape index: {}]
  %s1 = inlined_call_operand.vmem [shape: f32[32,128], index: 1, kind: input, shape index: {}]
  %s2 = inlined_call_operand.vmem [shape: f32[1,128], index: 2, kind: input, shape index: {}]
  %s3 = inlined_call_operand.vmem [shape: f32[1,128], index: 3, kind: input, shape index: {}]
  %s4 = inlined_call_operand.<no memory space> [shape: f32[1], index: 4, kind: input, shape index: {}]
  %s5 = inlined_call_operand.hbm [shape: f32[1,1,1024], index: 5, kind: output, shape index: {}]
  %s6 = sld [smem:[#allocation0]]
  $region30: #{tpu_custom_call.1} parent=0
    _
  %s8 = ssub.s32 1, %s6
  %s9 = scalar_select 0, %s8, %s6
  %10 = sst [smem:[#allocation2]] %s4
  $region1: #{tpu_custom_call.1} parent=0
    #allocation3 [shape = 'u8[4096]{0}', space=vmem, size = 0x1000, scoped, tag = 'output window, operand 0, single buffered']
    #allocation4 [shape = 's32[1]{0}', space=sflag, size = 0x4, scoped, tag = 'scoped memory for tpu_custom_call.1']
    %11 = vsyncpa [#allocation4], 0
    // Predicated region
    $region2: #{tpu_custom_call.1} parent=1 // pred_check
      _
    $region3: #{tpu_custom_call.1} parent=1 // pred_check_branch
      %13 = sbr.rel (0) target = $region5
    $region4: #{tpu_custom_call.1} parent=1 // pred_region
      _
    $region5: #{tpu_custom_call.1} parent=1 // pred_fallthru
      _
    // Predicated region
    $region6: #{tpu_custom_call.1} parent=1 // pred_check
      _
    $region7: #{tpu_custom_call.1} parent=1 // pred_check_branch
      %15 = sbr.rel (0) target = $region9
    $region8: #{tpu_custom_call.1} parent=1 // pred_region
      _
    $region9: #{tpu_custom_call.1} parent=1 // pred_fallthru
      _
    // Predicated region
    $region10: #{tpu_custom_call.1} parent=1 // pred_check
      _
    $region11: #{tpu_custom_call.1} parent=1 // pred_check_branch
      %17 = sbr.rel (0) target = $region13
    $region12: #{tpu_custom_call.1} parent=1 // pred_region
      _
    $region13: #{tpu_custom_call.1} parent=1 // pred_fallthru
      _
    // Predicated region
    $region14: #{tpu_custom_call.1} parent=1 // pred_check
      _
    $region15: #{tpu_custom_call.1} parent=1 // pred_check_branch
      %19 = sbr.rel (0) target = $region17
    $region16: #{tpu_custom_call.1} parent=1 // pred_region
      _
    $region17: #{tpu_custom_call.1} parent=1 // pred_fallthru
      _
    // Predicated region
    $region18: #{tpu_custom_call.1} parent=1 // pred_check
      _
    $region19: #{tpu_custom_call.1} parent=1 // pred_check_branch
      %21 = sbr.rel (0) target = $region21
    $region20: #{tpu_custom_call.1} parent=1 // pred_region
      _
    $region21: #{tpu_custom_call.1} parent=1 // pred_fallthru
      _
    %v22 = vld [vmem:[%s0] sm:$0xff]
    %v23 = vld [vmem:[%s0 + $0x8] sm:$0xff]
    %v24 = vld [vmem:[%s0 + $0x10] sm:$0xff]
    %v25 = vld [vmem:[%s0 + $0x18] sm:$0xff]
    %v26 = vld [vmem:[%s0 + $0x20] sm:$0xff]
    %v27 = vld [vmem:[%s0 + $0x28] sm:$0xff]
    %v28 = vld [vmem:[%s0 + $0x30] sm:$0xff]
    %v29 = vld [vmem:[%s0 + $0x38] sm:$0xff]
    %v30 = vld [vmem:[%s0 + $0x40] sm:$0xff]
    %v31 = vld [vmem:[%s0 + $0x48] sm:$0xff]
    %v32 = vld [vmem:[%s0 + $0x50] sm:$0xff]
    %v33 = vld [vmem:[%s0 + $0x58] sm:$0xff]
    %v34 = vld [vmem:[%s0 + $0x60] sm:$0xff]
    %v35 = vld [vmem:[%s0 + $0x68] sm:$0xff]
    %v36 = vld [vmem:[%s0 + $0x70] sm:$0xff]
    %v37 = vld [vmem:[%s0 + $0x78] sm:$0xff]
    %v38 = vld [vmem:[%s0 + $0x80] sm:$0xff]
    %v39 = vld [vmem:[%s0 + $0x88] sm:$0xff]
    %v40 = vld [vmem:[%s0 + $0x90] sm:$0xff]
    %v41 = vld [vmem:[%s0 + $0x98] sm:$0xff]
    %v42 = vld [vmem:[%s0 + $0xa0] sm:$0xff]
    %v43 = vld [vmem:[%s0 + $0xa8] sm:$0xff]
    %v44 = vld [vmem:[%s0 + $0xb0] sm:$0xff]
    %v45 = vld [vmem:[%s0 + $0xb8] sm:$0xff]
    %v46 = vld [vmem:[%s0 + $0xc0] sm:$0xff]
    %v47 = vld [vmem:[%s0 + $0xc8] sm:$0xff]
    %v48 = vld [vmem:[%s0 + $0xd0] sm:$0xff]
    %v49 = vld [vmem:[%s0 + $0xd8] sm:$0xff]
    %v50 = vld [vmem:[%s0 + $0xe0] sm:$0xff]
    %v51 = vld [vmem:[%s0 + $0xe8] sm:$0xff]
    %v52 = vld [vmem:[%s0 + $0xf0] sm:$0xff]
    %v53 = vld [vmem:[%s0 + $0xf8] sm:$0xff]
    %v54 = vld [vmem:[%s0 + $0x100] sm:$0xff]
    %v55 = vld [vmem:[%s0 + $0x108] sm:$0xff]
    %v56 = vld [vmem:[%s0 + $0x110] sm:$0xff]
    %v57 = vld [vmem:[%s0 + $0x118] sm:$0xff]
    %v58 = vld [vmem:[%s0 + $0x120] sm:$0xff]
    %v59 = vld [vmem:[%s0 + $0x128] sm:$0xff]
    %v60 = vld [vmem:[%s0 + $0x130] sm:$0xff]
    %v61 = vld [vmem:[%s0 + $0x138] sm:$0xff]
    %v62 = vld [vmem:[%s0 + $0x140] sm:$0xff]
    %v63 = vld [vmem:[%s0 + $0x148] sm:$0xff]
    %v64 = vld [vmem:[%s0 + $0x150] sm:$0xff]
    %v65 = vld [vmem:[%s0 + $0x158] sm:$0xff]
    %v66 = vld [vmem:[%s0 + $0x160] sm:$0xff]
    %v67 = vld [vmem:[%s0 + $0x168] sm:$0xff]
    %v68 = vld [vmem:[%s0 + $0x170] sm:$0xff]
    %v69 = vld [vmem:[%s0 + $0x178] sm:$0xff]
    %v70 = vld [vmem:[%s0 + $0x180] sm:$0xff]
    %v71 = vld [vmem:[%s0 + $0x188] sm:$0xff]
    %v72 = vld [vmem:[%s0 + $0x190] sm:$0xff]
    %v73 = vld [vmem:[%s0 + $0x198] sm:$0xff]
    %v74 = vld [vmem:[%s0 + $0x1a0] sm:$0xff]
    %v75 = vld [vmem:[%s0 + $0x1a8] sm:$0xff]
    %v76 = vld [vmem:[%s0 + $0x1b0] sm:$0xff]
    %v77 = vld [vmem:[%s0 + $0x1b8] sm:$0xff]
    %v78 = vld [vmem:[%s0 + $0x1c0] sm:$0xff]
    %v79 = vld [vmem:[%s0 + $0x1c8] sm:$0xff]
    %v80 = vld [vmem:[%s0 + $0x1d0] sm:$0xff]
    %v81 = vld [vmem:[%s0 + $0x1d8] sm:$0xff]
    %v82 = vld [vmem:[%s0 + $0x1e0] sm:$0xff]
    %v83 = vld [vmem:[%s0 + $0x1e8] sm:$0xff]
    %v84 = vld [vmem:[%s0 + $0x1f0] sm:$0xff]
    %v85 = vld [vmem:[%s0 + $0x1f8] sm:$0xff]
    %v86 = vld [vmem:[%s0 + $0x200] sm:$0xff]
    %v87 = vld [vmem:[%s0 + $0x208] sm:$0xff]
    %v88 = vld [vmem:[%s0 + $0x210] sm:$0xff]
    %v89 = vld [vmem:[%s0 + $0x218] sm:$0xff]
    %v90 = vld [vmem:[%s0 + $0x220] sm:$0xff]
    %v91 = vld [vmem:[%s0 + $0x228] sm:$0xff]
    %v92 = vld [vmem:[%s0 + $0x230] sm:$0xff]
    %v93 = vld [vmem:[%s0 + $0x238] sm:$0xff]
    %v94 = vld [vmem:[%s0 + $0x240] sm:$0xff]
    %v95 = vld [vmem:[%s0 + $0x248] sm:$0xff]
    %v96 = vld [vmem:[%s0 + $0x250] sm:$0xff]
    %v97 = vld [vmem:[%s0 + $0x258] sm:$0xff]
    %v98 = vld [vmem:[%s0 + $0x260] sm:$0xff]
    %v99 = vld [vmem:[%s0 + $0x268] sm:$0xff]
    %v100 = vld [vmem:[%s0 + $0x270] sm:$0xff]
    %v101 = vld [vmem:[%s0 + $0x278] sm:$0xff]
    %v102 = vld [vmem:[%s0 + $0x280] sm:$0xff]
    %v103 = vld [vmem:[%s0 + $0x288] sm:$0xff]
    %v104 = vld [vmem:[%s0 + $0x290] sm:$0xff]
    %v105 = vld [vmem:[%s0 + $0x298] sm:$0xff]
    %v106 = vld [vmem:[%s0 + $0x2a0] sm:$0xff]
    %v107 = vld [vmem:[%s0 + $0x2a8] sm:$0xff]
    %v108 = vld [vmem:[%s0 + $0x2b0] sm:$0xff]
    %v109 = vld [vmem:[%s0 + $0x2b8] sm:$0xff]
    %v110 = vld [vmem:[%s0 + $0x2c0] sm:$0xff]
    %v111 = vld [vmem:[%s0 + $0x2c8] sm:$0xff]
    %v112 = vld [vmem:[%s0 + $0x2d0] sm:$0xff]
    %v113 = vld [vmem:[%s0 + $0x2d8] sm:$0xff]
    %v114 = vld [vmem:[%s0 + $0x2e0] sm:$0xff]
    %v115 = vld [vmem:[%s0 + $0x2e8] sm:$0xff]
    %v116 = vld [vmem:[%s0 + $0x2f0] sm:$0xff]
    %v117 = vld [vmem:[%s0 + $0x2f8] sm:$0xff]
    %v118 = vld [vmem:[%s0 + $0x300] sm:$0xff]
    %v119 = vld [vmem:[%s0 + $0x308] sm:$0xff]
    %v120 = vld [vmem:[%s0 + $0x310] sm:$0xff]
    %v121 = vld [vmem:[%s0 + $0x318] sm:$0xff]
    %v122 = vld [vmem:[%s0 + $0x320] sm:$0xff]
    %v123 = vld [vmem:[%s0 + $0x328] sm:$0xff]
    %v124 = vld [vmem:[%s0 + $0x330] sm:$0xff]
    %v125 = vld [vmem:[%s0 + $0x338] sm:$0xff]
    %v126 = vld [vmem:[%s0 + $0x340] sm:$0xff]
    %v127 = vld [vmem:[%s0 + $0x348] sm:$0xff]
    %v128 = vld [vmem:[%s0 + $0x350] sm:$0xff]
    %v129 = vld [vmem:[%s0 + $0x358] sm:$0xff]
    %v130 = vld [vmem:[%s0 + $0x360] sm:$0xff]
    %v131 = vld [vmem:[%s0 + $0x368] sm:$0xff]
    %v132 = vld [vmem:[%s0 + $0x370] sm:$0xff]
    %v133 = vld [vmem:[%s0 + $0x378] sm:$0xff]
    %v134 = vld [vmem:[%s0 + $0x380] sm:$0xff]
    %v135 = vld [vmem:[%s0 + $0x388] sm:$0xff]
    %v136 = vld [vmem:[%s0 + $0x390] sm:$0xff]
    %v137 = vld [vmem:[%s0 + $0x398] sm:$0xff]
    %v138 = vld [vmem:[%s0 + $0x3a0] sm:$0xff]
    %v139 = vld [vmem:[%s0 + $0x3a8] sm:$0xff]
    %v140 = vld [vmem:[%s0 + $0x3b0] sm:$0xff]
    %v141 = vld [vmem:[%s0 + $0x3b8] sm:$0xff]
    %v142 = vld [vmem:[%s0 + $0x3c0] sm:$0xff]
    %v143 = vld [vmem:[%s0 + $0x3c8] sm:$0xff]
    %v144 = vld [vmem:[%s0 + $0x3d0] sm:$0xff]
    %v145 = vld [vmem:[%s0 + $0x3d8] sm:$0xff]
    %v146 = vld [vmem:[%s0 + $0x3e0] sm:$0xff]
    %v147 = vld [vmem:[%s0 + $0x3e8] sm:$0xff]
    %v148 = vld [vmem:[%s0 + $0x3f0] sm:$0xff]
    %v149 = vld [vmem:[%s0 + $0x3f8] sm:$0xff]
    %v150 = vld [vmem:[%s1] sm:$0xff]
    %v151 = vld [vmem:[%s1 + $0x8] sm:$0xff]
    %v152 = vld [vmem:[%s1 + $0x10] sm:$0xff]
    %v153 = vld [vmem:[%s1 + $0x18] sm:$0xff]
    %v154 = vld [vmem:[%s2] sm:$0x1]
    %v156 = vlaneseq
    %v157 = vshrl.u32 %v156, 7
    %v158 = vsub.s32 0, %v157
    %v159 = vrot.slane %v154, %v158
    %vm161 = vcmask 261120
    %v163 = vsel %vm161, %v22, 0
    %v166 = vsel %vm161, %v23, 0
    %v169 = vsel %vm161, %v24, 0
    %v172 = vsel %vm161, %v25, 0
    %v175 = vsel %vm161, %v26, 0
    %v178 = vsel %vm161, %v27, 0
    %v181 = vsel %vm161, %v28, 0
    %v184 = vsel %vm161, %v29, 0
    %v187 = vsel %vm161, %v30, 0
    %v190 = vsel %vm161, %v31, 0
    %v193 = vsel %vm161, %v32, 0
    %v196 = vsel %vm161, %v33, 0
    %v199 = vsel %vm161, %v34, 0
    %v202 = vsel %vm161, %v35, 0
    %v205 = vsel %vm161, %v36, 0
    %v208 = vsel %vm161, %v37, 0
    %v211 = vsel %vm161, %v38, 0
    %v214 = vsel %vm161, %v39, 0
    %v217 = vsel %vm161, %v40, 0
    %v220 = vsel %vm161, %v41, 0
    %v223 = vsel %vm161, %v42, 0
    %v226 = vsel %vm161, %v43, 0
    %v229 = vsel %vm161, %v44, 0
    %v232 = vsel %vm161, %v45, 0
    %v235 = vsel %vm161, %v46, 0
    %v238 = vsel %vm161, %v47, 0
    %v241 = vsel %vm161, %v48, 0
    %v244 = vsel %vm161, %v49, 0
    %v247 = vsel %vm161, %v50, 0
    %v250 = vsel %vm161, %v51, 0
    %v253 = vsel %vm161, %v52, 0
    %v256 = vsel %vm161, %v53, 0
    %v259 = vsel %vm161, %v54, 0
    %v262 = vsel %vm161, %v55, 0
    %v265 = vsel %vm161, %v56, 0
    %v268 = vsel %vm161, %v57, 0
    %v271 = vsel %vm161, %v58, 0
    %v274 = vsel %vm161, %v59, 0
    %v277 = vsel %vm161, %v60, 0
    %v280 = vsel %vm161, %v61, 0
    %v283 = vsel %vm161, %v62, 0
    %v286 = vsel %vm161, %v63, 0
    %v289 = vsel %vm161, %v64, 0
    %v292 = vsel %vm161, %v65, 0
    %v295 = vsel %vm161, %v66, 0
    %v298 = vsel %vm161, %v67, 0
    %v301 = vsel %vm161, %v68, 0
    %v304 = vsel %vm161, %v69, 0
    %v307 = vsel %vm161, %v70, 0
    %v310 = vsel %vm161, %v71, 0
    %v313 = vsel %vm161, %v72, 0
    %v316 = vsel %vm161, %v73, 0
    %v319 = vsel %vm161, %v74, 0
    %v322 = vsel %vm161, %v75, 0
    %v325 = vsel %vm161, %v76, 0
    %v328 = vsel %vm161, %v77, 0
    %v331 = vsel %vm161, %v78, 0
    %v334 = vsel %vm161, %v79, 0
    %v337 = vsel %vm161, %v80, 0
    %v340 = vsel %vm161, %v81, 0
    %v343 = vsel %vm161, %v82, 0
    %v346 = vsel %vm161, %v83, 0
    %v349 = vsel %vm161, %v84, 0
    %v352 = vsel %vm161, %v85, 0
    %v355 = vsel %vm161, %v86, 0
    %v358 = vsel %vm161, %v87, 0
    %v361 = vsel %vm161, %v88, 0
    %v364 = vsel %vm161, %v89, 0
    %v367 = vsel %vm161, %v90, 0
    %v370 = vsel %vm161, %v91, 0
    %v373 = vsel %vm161, %v92, 0
    %v376 = vsel %vm161, %v93, 0
    %v379 = vsel %vm161, %v94, 0
    %v382 = vsel %vm161, %v95, 0
    %v385 = vsel %vm161, %v96, 0
    %v388 = vsel %vm161, %v97, 0
    %v391 = vsel %vm161, %v98, 0
    %v394 = vsel %vm161, %v99, 0
    %v397 = vsel %vm161, %v100, 0
    %v400 = vsel %vm161, %v101, 0
    %v403 = vsel %vm161, %v102, 0
    %v406 = vsel %vm161, %v103, 0
    %v409 = vsel %vm161, %v104, 0
    %v412 = vsel %vm161, %v105, 0
    %v415 = vsel %vm161, %v106, 0
    %v418 = vsel %vm161, %v107, 0
    %v421 = vsel %vm161, %v108, 0
    %v424 = vsel %vm161, %v109, 0
    %v427 = vsel %vm161, %v110, 0
    %v430 = vsel %vm161, %v111, 0
    %v433 = vsel %vm161, %v112, 0
    %v436 = vsel %vm161, %v113, 0
    %v439 = vsel %vm161, %v114, 0
    %v442 = vsel %vm161, %v115, 0
    %v445 = vsel %vm161, %v116, 0
    %v448 = vsel %vm161, %v117, 0
    %v451 = vsel %vm161, %v118, 0
    %v454 = vsel %vm161, %v119, 0
    %v457 = vsel %vm161, %v120, 0
    %v460 = vsel %vm161, %v121, 0
    %v463 = vsel %vm161, %v122, 0
    %v466 = vsel %vm161, %v123, 0
    %v469 = vsel %vm161, %v124, 0
    %v472 = vsel %vm161, %v125, 0
    %v475 = vsel %vm161, %v126, 0
    %v478 = vsel %vm161, %v127, 0
    %v481 = vsel %vm161, %v128, 0
    %v484 = vsel %vm161, %v129, 0
    %v487 = vsel %vm161, %v130, 0
    %v490 = vsel %vm161, %v131, 0
    %v493 = vsel %vm161, %v132, 0
    %v496 = vsel %vm161, %v133, 0
    %v499 = vsel %vm161, %v134, 0
    %v502 = vsel %vm161, %v135, 0
    %v505 = vsel %vm161, %v136, 0
    %v508 = vsel %vm161, %v137, 0
    %v511 = vsel %vm161, %v138, 0
    %v514 = vsel %vm161, %v139, 0
    %v517 = vsel %vm161, %v140, 0
    %v520 = vsel %vm161, %v141, 0
    %v523 = vsel %vm161, %v142, 0
    %v526 = vsel %vm161, %v143, 0
    %v529 = vsel %vm161, %v144, 0
    %v532 = vsel %vm161, %v145, 0
    %v535 = vsel %vm161, %v146, 0
    %v538 = vsel %vm161, %v147, 0
    %v541 = vsel %vm161, %v148, 0
    %v544 = vsel %vm161, %v149, 0
    %546 = vmatprep.subr.mxu0 0.0
    %547 = vmatpush1.msra.mxu0 %v150
    %548 = vmatprep.subr.mxu0 0.0
    %549 = vmatpush1.msra.mxu0 %v151
    %550 = vmatprep.subr.mxu0 0.0
    %551 = vmatpush1.msra.mxu0 %v152
    %552 = vmatprep.subr.mxu0 0.0
    %553 = vmatpush1.msra.mxu0 %v153
    %554 = vmatprep.subr.mxu0 0.0
    %555 = vmatpush1.msra.mxu0 0.0
    %556 = vmatprep.subr.mxu0 0.0
    %557 = vmatpush1.msra.mxu0 0.0
    %558 = vmatprep.subr.mxu0 0.0
    %559 = vmatpush1.msra.mxu0 0.0
    %560 = vmatprep.subr.mxu0 0.0
    %561 = vmatpush1.msra.mxu0 0.0
    %562 = vmatprep.subr.mxu0 0.0
    %563 = vmatpush1.msra.mxu0 0.0
    %564 = vmatprep.subr.mxu0 0.0
    %565 = vmatpush1.msra.mxu0 0.0
    %566 = vmatprep.subr.mxu0 0.0
    %567 = vmatpush1.msra.mxu0 0.0
    %568 = vmatprep.subr.mxu0 0.0
    %569 = vmatpush1.msra.mxu0 0.0
    %570 = vmatprep.subr.mxu0 0.0
    %571 = vmatpush1.msra.mxu0 0.0
    %572 = vmatprep.subr.mxu0 0.0
    %573 = vmatpush1.msra.mxu0 0.0
    %574 = vmatprep.subr.mxu0 0.0
    %575 = vmatpush1.msra.mxu0 0.0
    %576 = vmatprep.subr.mxu0 0.0
    %577 = vmatpush1.msra.mxu0 0.0
    %578 = vmatprep.subr.mxu0 0.0
    %579 = vmatpush1.msra.mxu0 0.0
    %580 = vmatprep.subr.mxu0 0.0
    %581 = vmatpush1.msra.mxu0 0.0
    %582 = vmatprep.subr.mxu0 0.0
    %583 = vmatpush1.msra.mxu0 0.0
    %584 = vmatprep.subr.mxu0 0.0
    %585 = vmatpush1.msra.mxu0 0.0
    %586 = vmatprep.subr.mxu0 0.0
    %587 = vmatpush1.msra.mxu0 0.0
    %588 = vmatprep.subr.mxu0 0.0
    %589 = vmatpush1.msra.mxu0 0.0
    %590 = vmatprep.subr.mxu0 0.0
    %591 = vmatpush1.msra.mxu0 0.0
    %592 = vmatprep.subr.mxu0 0.0
    %593 = vmatpush1.msra.mxu0 0.0
    %594 = vmatprep.subr.mxu0 0.0
    %595 = vmatpush1.msra.mxu0 0.0
    %596 = vmatprep.subr.mxu0 0.0
    %597 = vmatpush1.msra.mxu0 0.0
    %598 = vmatprep.subr.mxu0 0.0
    %599 = vmatpush1.msra.mxu0 0.0
    %600 = vmatprep.subr.mxu0 0.0
    %601 = vmatpush1.msra.mxu0 0.0
    %602 = vmatprep.subr.mxu0 0.0
    %603 = vmatpush1.msra.mxu0 0.0
    %604 = vmatprep.subr.mxu0 0.0
    %605 = vmatpush1.msra.mxu0 0.0
    %606 = vmatprep.subr.mxu0 0.0
    %607 = vmatpush1.msra.mxu0 0.0
    %608 = vmatprep.subr.mxu0 0.0
    %609 = vmatpush1.msra.mxu0 0.0
    %610 = vmatprep.mubr.f32.mxu0 0.0
    %611 = vmatmul.mubr.f32.gmra.mrb[0].mxu0 %v163
    %v612 = vpop.f32.mrb[0].mxu0
    %v613 = vadd.f32 %v159, %v612
    %v614 = vpop.f32.mrb[0].mxu0
    %615 = vmatprep.mubr.f32.mxu0 0.0
    %616 = vmatmul.mubr.f32.gmra.mrb[0].mxu0 %v166
    %v617 = vpop.f32.mrb[0].mxu0
    %v618 = vadd.f32 %v159, %v617
    %v619 = vpop.f32.mrb[0].mxu0
    %620 = vmatprep.mubr.f32.mxu0 0.0
    %621 = vmatmul.mubr.f32.gmra.mrb[0].mxu0 %v169
    %v622 = vpop.f32.mrb[0].mxu0
    %v623 = vadd.f32 %v159, %v622
    %v624 = vpop.f32.mrb[0].mxu0
    %625 = vmatprep.mubr.f32.mxu0 0.0
    %626 = vmatmul.mubr.f32.gmra.mrb[0].mxu0 %v172
    %v627 = vpop.f32.mrb[0].mxu0
    %v628 = vadd.f32 %v159, %v627
    %v629 = vpop.f32.mrb[0].mxu0
    %630 = vmatprep.mubr.f32.mxu0 0.0
    %631 = vmatmul.mubr.f32.gmra.mrb[0].mxu0 %v175
    %v632 = vpop.f32.mrb[0].mxu0
    %v633 = vadd.f32 %v159, %v632
    %v634 = vpop.f32.mrb[0].mxu0
    %635 = vmatprep.mubr.f32.mxu0 0.0
    %636 = vmatmul.mubr.f32.gmra.mrb[0].mxu0 %v178
    %v637 = vpop.f32.mrb[0].mxu0
    %v638 = vadd.f32 %v159, %v637
    %v639 = vpop.f32.mrb[0].mxu0
    %640 = vmatprep.mubr.f32.mxu0 0.0
    %641 = vmatmul.mubr.f32.gmra.mrb[0].mxu0 %v181
    %v642 = vpop.f32.mrb[0].mxu0
    %v643 = vadd.f32 %v159, %v642
    %v644 = vpop.f32.mrb[0].mxu0
    %645 = vmatprep.mubr.f32.mxu0 0.0
    %646 = vmatmul.mubr.f32.gmra.mrb[0].mxu0 %v184
    %v647 = vpop.f32.mrb[0].mxu0
    %v648 = vadd.f32 %v159, %v647
    %v649 = vpop.f32.mrb[0].mxu0
    %650 = vmatprep.mubr.f32.mxu0 0.0
    %651 = vmatmul.mubr.f32.gmra.mrb[0].mxu0 %v187
    %v652 = vpop.f32.mrb[0].mxu0
    %v653 = vadd.f32 %v159, %v652
    %v654 = vpop.f32.mrb[0].mxu0
    %655 = vmatprep.mubr.f32.mxu0 0.0
    %656 = vmatmul.mubr.f32.gmra.mrb[0].mxu0 %v190
    %v657 = vpop.f32.mrb[0].mxu0
    %v658 = vadd.f32 %v159, %v657
    %v659 = vpop.f32.mrb[0].mxu0
    %660 = vmatprep.mubr.f32.mxu0 0.0
    %661 = vmatmul.mubr.f32.gmra.mrb[0].mxu0 %v193
    %v662 = vpop.f32.mrb[0].mxu0
    %v663 = vadd.f32 %v159, %v662
    %v664 = vpop.f32.mrb[0].mxu0
    %665 = vmatprep.mubr.f32.mxu0 0.0
    %666 = vmatmul.mubr.f32.gmra.mrb[0].mxu0 %v196
    %v667 = vpop.f32.mrb[0].mxu0
    %v668 = vadd.f32 %v159, %v667
    %v669 = vpop.f32.mrb[0].mxu0
    %670 = vmatprep.mubr.f32.mxu0 0.0
    %671 = vmatmul.mubr.f32.gmra.mrb[0].mxu0 %v199
    %v672 = vpop.f32.mrb[0].mxu0
    %v673 = vadd.f32 %v159, %v672
    %v674 = vpop.f32.mrb[0].mxu0
    %675 = vmatprep.mubr.f32.mxu0 0.0
    %676 = vmatmul.mubr.f32.gmra.mrb[0].mxu0 %v202
    %v677 = vpop.f32.mrb[0].mxu0
    %v678 = vadd.f32 %v159, %v677
    %v679 = vpop.f32.mrb[0].mxu0
    %680 = vmatprep.mubr.f32.mxu0 0.0
    %681 = vmatmul.mubr.f32.gmra.mrb[0].mxu0 %v205
    %v682 = vpop.f32.mrb[0].mxu0
    %v683 = vadd.f32 %v159, %v682
    %v684 = vpop.f32.mrb[0].mxu0
    %685 = vmatprep.mubr.f32.mxu0 0.0
    %686 = vmatmul.mubr.f32.gmra.mrb[0].mxu0 %v208
    %v687 = vpop.f32.mrb[0].mxu0
    %v688 = vadd.f32 %v159, %v687
    %v689 = vpop.f32.mrb[0].mxu0
    %690 = vmatprep.mubr.f32.mxu0 0.0
    %691 = vmatmul.mubr.f32.gmra.mrb[0].mxu0 %v211
    %v692 = vpop.f32.mrb[0].mxu0
    %v693 = vadd.f32 %v159, %v692
    %v694 = vpop.f32.mrb[0].mxu0
    %695 = vmatprep.mubr.f32.mxu0 0.0
    %696 = vmatmul.mubr.f32.gmra.mrb[0].mxu0 %v214
    %v697 = vpop.f32.mrb[0].mxu0
    %v698 = vadd.f32 %v159, %v697
    %v699 = vpop.f32.mrb[0].mxu0
    %700 = vmatprep.mubr.f32.mxu0 0.0
    %701 = vmatmul.mubr.f32.gmra.mrb[0].mxu0 %v217
    %v702 = vpop.f32.mrb[0].mxu0
    %v703 = vadd.f32 %v159, %v702
    %v704 = vpop.f32.mrb[0].mxu0
    %705 = vmatprep.mubr.f32.mxu0 0.0
    %706 = vmatmul.mubr.f32.gmra.mrb[0].mxu0 %v220
    %v707 = vpop.f32.mrb[0].mxu0
    %v708 = vadd.f32 %v159, %v707
    %v709 = vpop.f32.mrb[0].mxu0
    %710 = vmatprep.mubr.f32.mxu0 0.0
    %711 = vmatmul.mubr.f32.gmra.mrb[0].mxu0 %v223
    %v712 = vpop.f32.mrb[0].mxu0
    %v713 = vadd.f32 %v159, %v712
    %v714 = vpop.f32.mrb[0].mxu0
    %715 = vmatprep.mubr.f32.mxu0 0.0
    %716 = vmatmul.mubr.f32.gmra.mrb[0].mxu0 %v226
    %v717 = vpop.f32.mrb[0].mxu0
    %v718 = vadd.f32 %v159, %v717
    %v719 = vpop.f32.mrb[0].mxu0
    %720 = vmatprep.mubr.f32.mxu0 0.0
    %721 = vmatmul.mubr.f32.gmra.mrb[0].mxu0 %v229
    %v722 = vpop.f32.mrb[0].mxu0
    %v723 = vadd.f32 %v159, %v722
    %v724 = vpop.f32.mrb[0].mxu0
    %725 = vmatprep.mubr.f32.mxu0 0.0
    %726 = vmatmul.mubr.f32.gmra.mrb[0].mxu0 %v232
    %v727 = vpop.f32.mrb[0].mxu0
    %v728 = vadd.f32 %v159, %v727
    %v729 = vpop.f32.mrb[0].mxu0
    %730 = vmatprep.mubr.f32.mxu0 0.0
    %731 = vmatmul.mubr.f32.gmra.mrb[0].mxu0 %v235
    %v732 = vpop.f32.mrb[0].mxu0
    %v733 = vadd.f32 %v159, %v732
    %v734 = vpop.f32.mrb[0].mxu0
    %735 = vmatprep.mubr.f32.mxu0 0.0
    %736 = vmatmul.mubr.f32.gmra.mrb[0].mxu0 %v238
    %v737 = vpop.f32.mrb[0].mxu0
    %v738 = vadd.f32 %v159, %v737
    %v739 = vpop.f32.mrb[0].mxu0
    %740 = vmatprep.mubr.f32.mxu0 0.0
    %741 = vmatmul.mubr.f32.gmra.mrb[0].mxu0 %v241
    %v742 = vpop.f32.mrb[0].mxu0
    %v743 = vadd.f32 %v159, %v742
    %v744 = vpop.f32.mrb[0].mxu0
    %745 = vmatprep.mubr.f32.mxu0 0.0
    %746 = vmatmul.mubr.f32.gmra.mrb[0].mxu0 %v244
    %v747 = vpop.f32.mrb[0].mxu0
    %v748 = vadd.f32 %v159, %v747
    %v749 = vpop.f32.mrb[0].mxu0
    %750 = vmatprep.mubr.f32.mxu0 0.0
    %751 = vmatmul.mubr.f32.gmra.mrb[0].mxu0 %v247
    %v752 = vpop.f32.mrb[0].mxu0
    %v753 = vadd.f32 %v159, %v752
    %v754 = vpop.f32.mrb[0].mxu0
    %755 = vmatprep.mubr.f32.mxu0 0.0
    %756 = vmatmul.mubr.f32.gmra.mrb[0].mxu0 %v250
    %v757 = vpop.f32.mrb[0].mxu0
    %v758 = vadd.f32 %v159, %v757
    %v759 = vpop.f32.mrb[0].mxu0
    %760 = vmatprep.mubr.f32.mxu0 0.0
    %761 = vmatmul.mubr.f32.gmra.mrb[0].mxu0 %v253
    %v762 = vpop.f32.mrb[0].mxu0
    %v763 = vadd.f32 %v159, %v762
    %v764 = vpop.f32.mrb[0].mxu0
    %765 = vmatprep.mubr.f32.mxu0 0.0
    %766 = vmatmul.mubr.f32.gmra.mrb[0].mxu0 %v256
    %v767 = vpop.f32.mrb[0].mxu0
    %v768 = vadd.f32 %v159, %v767
    %v769 = vpop.f32.mrb[0].mxu0
    %770 = vmatprep.mubr.f32.mxu0 0.0
    %771 = vmatmul.mubr.f32.gmra.mrb[0].mxu0 %v259
    %v772 = vpop.f32.mrb[0].mxu0
    %v773 = vadd.f32 %v159, %v772
    %v774 = vpop.f32.mrb[0].mxu0
    %775 = vmatprep.mubr.f32.mxu0 0.0
    %776 = vmatmul.mubr.f32.gmra.mrb[0].mxu0 %v262
    %v777 = vpop.f32.mrb[0].mxu0
    %v778 = vadd.f32 %v159, %v777
    %v779 = vpop.f32.mrb[0].mxu0
    %780 = vmatprep.mubr.f32.mxu0 0.0
    %781 = vmatmul.mubr.f32.gmra.mrb[0].mxu0 %v265
    %v782 = vpop.f32.mrb[0].mxu0
    %v783 = vadd.f32 %v159, %v782
    %v784 = vpop.f32.mrb[0].mxu0
    %785 = vmatprep.mubr.f32.mxu0 0.0
    %786 = vmatmul.mubr.f32.gmra.mrb[0].mxu0 %v268
    %v787 = vpop.f32.mrb[0].mxu0
    %v788 = vadd.f32 %v159, %v787
    %v789 = vpop.f32.mrb[0].mxu0
    %790 = vmatprep.mubr.f32.mxu0 0.0
    %791 = vmatmul.mubr.f32.gmra.mrb[0].mxu0 %v271
    %v792 = vpop.f32.mrb[0].mxu0
    %v793 = vadd.f32 %v159, %v792
    %v794 = vpop.f32.mrb[0].mxu0
    %795 = vmatprep.mubr.f32.mxu0 0.0
    %796 = vmatmul.mubr.f32.gmra.mrb[0].mxu0 %v274
    %v797 = vpop.f32.mrb[0].mxu0
    %v798 = vadd.f32 %v159, %v797
    %v799 = vpop.f32.mrb[0].mxu0
    %800 = vmatprep.mubr.f32.mxu0 0.0
    %801 = vmatmul.mubr.f32.gmra.mrb[0].mxu0 %v277
    %v802 = vpop.f32.mrb[0].mxu0
    %v803 = vadd.f32 %v159, %v802
    %v804 = vpop.f32.mrb[0].mxu0
    %805 = vmatprep.mubr.f32.mxu0 0.0
    %806 = vmatmul.mubr.f32.gmra.mrb[0].mxu0 %v280
    %v807 = vpop.f32.mrb[0].mxu0
    %v808 = vadd.f32 %v159, %v807
    %v809 = vpop.f32.mrb[0].mxu0
    %810 = vmatprep.mubr.f32.mxu0 0.0
    %811 = vmatmul.mubr.f32.gmra.mrb[0].mxu0 %v283
    %v812 = vpop.f32.mrb[0].mxu0
    %v813 = vadd.f32 %v159, %v812
    %v814 = vpop.f32.mrb[0].mxu0
    %815 = vmatprep.mubr.f32.mxu0 0.0
    %816 = vmatmul.mubr.f32.gmra.mrb[0].mxu0 %v286
    %v817 = vpop.f32.mrb[0].mxu0
    %v818 = vadd.f32 %v159, %v817
    %v819 = vpop.f32.mrb[0].mxu0
    %820 = vmatprep.mubr.f32.mxu0 0.0
    %821 = vmatmul.mubr.f32.gmra.mrb[0].mxu0 %v289
    %v822 = vpop.f32.mrb[0].mxu0
    %v823 = vadd.f32 %v159, %v822
    %v824 = vpop.f32.mrb[0].mxu0
    %825 = vmatprep.mubr.f32.mxu0 0.0
    %826 = vmatmul.mubr.f32.gmra.mrb[0].mxu0 %v292
    %v827 = vpop.f32.mrb[0].mxu0
    %v828 = vadd.f32 %v159, %v827
    %v829 = vpop.f32.mrb[0].mxu0
    %830 = vmatprep.mubr.f32.mxu0 0.0
    %831 = vmatmul.mubr.f32.gmra.mrb[0].mxu0 %v295
    %v832 = vpop.f32.mrb[0].mxu0
    %v833 = vadd.f32 %v159, %v832
    %v834 = vpop.f32.mrb[0].mxu0
    %835 = vmatprep.mubr.f32.mxu0 0.0
    %836 = vmatmul.mubr.f32.gmra.mrb[0].mxu0 %v298
    %v837 = vpop.f32.mrb[0].mxu0
    %v838 = vadd.f32 %v159, %v837
    %v839 = vpop.f32.mrb[0].mxu0
    %840 = vmatprep.mubr.f32.mxu0 0.0
    %841 = vmatmul.mubr.f32.gmra.mrb[0].mxu0 %v301
    %v842 = vpop.f32.mrb[0].mxu0
    %v843 = vadd.f32 %v159, %v842
    %v844 = vpop.f32.mrb[0].mxu0
    %845 = vmatprep.mubr.f32.mxu0 0.0
    %846 = vmatmul.mubr.f32.gmra.mrb[0].mxu0 %v304
    %v847 = vpop.f32.mrb[0].mxu0
    %v848 = vadd.f32 %v159, %v847
    %v849 = vpop.f32.mrb[0].mxu0
    %850 = vmatprep.mubr.f32.mxu0 0.0
    %851 = vmatmul.mubr.f32.gmra.mrb[0].mxu0 %v307
    %v852 = vpop.f32.mrb[0].mxu0
    %v853 = vadd.f32 %v159, %v852
    %v854 = vpop.f32.mrb[0].mxu0
    %855 = vmatprep.mubr.f32.mxu0 0.0
    %856 = vmatmul.mubr.f32.gmra.mrb[0].mxu0 %v310
    %v857 = vpop.f32.mrb[0].mxu0
    %v858 = vadd.f32 %v159, %v857
    %v859 = vpop.f32.mrb[0].mxu0
    %860 = vmatprep.mubr.f32.mxu0 0.0
    %861 = vmatmul.mubr.f32.gmra.mrb[0].mxu0 %v313
    %v862 = vpop.f32.mrb[0].mxu0
    %v863 = vadd.f32 %v159, %v862
    %v864 = vpop.f32.mrb[0].mxu0
    %865 = vmatprep.mubr.f32.mxu0 0.0
    %866 = vmatmul.mubr.f32.gmra.mrb[0].mxu0 %v316
    %v867 = vpop.f32.mrb[0].mxu0
    %v868 = vadd.f32 %v159, %v867
    %v869 = vpop.f32.mrb[0].mxu0
    %870 = vmatprep.mubr.f32.mxu0 0.0
    %871 = vmatmul.mubr.f32.gmra.mrb[0].mxu0 %v319
    %v872 = vpop.f32.mrb[0].mxu0
    %v873 = vadd.f32 %v159, %v872
    %v874 = vpop.f32.mrb[0].mxu0
    %875 = vmatprep.mubr.f32.mxu0 0.0
    %876 = vmatmul.mubr.f32.gmra.mrb[0].mxu0 %v322
    %v877 = vpop.f32.mrb[0].mxu0
    %v878 = vadd.f32 %v159, %v877
    %v879 = vpop.f32.mrb[0].mxu0
    %880 = vmatprep.mubr.f32.mxu0 0.0
    %881 = vmatmul.mubr.f32.gmra.mrb[0].mxu0 %v325
    %v882 = vpop.f32.mrb[0].mxu0
    %v883 = vadd.f32 %v159, %v882
    %v884 = vpop.f32.mrb[0].mxu0
    %885 = vmatprep.mubr.f32.mxu0 0.0
    %886 = vmatmul.mubr.f32.gmra.mrb[0].mxu0 %v328
    %v887 = vpop.f32.mrb[0].mxu0
    %v888 = vadd.f32 %v159, %v887
    %v889 = vpop.f32.mrb[0].mxu0
    %890 = vmatprep.mubr.f32.mxu0 0.0
    %891 = vmatmul.mubr.f32.gmra.mrb[0].mxu0 %v331
    %v892 = vpop.f32.mrb[0].mxu0
    %v893 = vadd.f32 %v159, %v892
    %v894 = vpop.f32.mrb[0].mxu0
    %895 = vmatprep.mubr.f32.mxu0 0.0
    %896 = vmatmul.mubr.f32.gmra.mrb[0].mxu0 %v334
    %v897 = vpop.f32.mrb[0].mxu0
    %v898 = vadd.f32 %v159, %v897
    %v899 = vpop.f32.mrb[0].mxu0
    %900 = vmatprep.mubr.f32.mxu0 0.0
    %901 = vmatmul.mubr.f32.gmra.mrb[0].mxu0 %v337
    %v902 = vpop.f32.mrb[0].mxu0
    %v903 = vadd.f32 %v159, %v902
    %v904 = vpop.f32.mrb[0].mxu0
    %905 = vmatprep.mubr.f32.mxu0 0.0
    %906 = vmatmul.mubr.f32.gmra.mrb[0].mxu0 %v340
    %v907 = vpop.f32.mrb[0].mxu0
    %v908 = vadd.f32 %v159, %v907
    %v909 = vpop.f32.mrb[0].mxu0
    %910 = vmatprep.mubr.f32.mxu0 0.0
    %911 = vmatmul.mubr.f32.gmra.mrb[0].mxu0 %v343
    %v912 = vpop.f32.mrb[0].mxu0
    %v913 = vadd.f32 %v159, %v912
    %v914 = vpop.f32.mrb[0].mxu0
    %915 = vmatprep.mubr.f32.mxu0 0.0
    %916 = vmatmul.mubr.f32.gmra.mrb[0].mxu0 %v346
    %v917 = vpop.f32.mrb[0].mxu0
    %v918 = vadd.f32 %v159, %v917
    %v919 = vpop.f32.mrb[0].mxu0
    %920 = vmatprep.mubr.f32.mxu0 0.0
    %921 = vmatmul.mubr.f32.gmra.mrb[0].mxu0 %v349
    %v922 = vpop.f32.mrb[0].mxu0
    %v923 = vadd.f32 %v159, %v922
    %v924 = vpop.f32.mrb[0].mxu0
    %925 = vmatprep.mubr.f32.mxu0 0.0
    %926 = vmatmul.mubr.f32.gmra.mrb[0].mxu0 %v352
    %v927 = vpop.f32.mrb[0].mxu0
    %v928 = vadd.f32 %v159, %v927
    %v929 = vpop.f32.mrb[0].mxu0
    %930 = vmatprep.mubr.f32.mxu0 0.0
    %931 = vmatmul.mubr.f32.gmra.mrb[0].mxu0 %v355
    %v932 = vpop.f32.mrb[0].mxu0
    %v933 = vadd.f32 %v159, %v932
    %v934 = vpop.f32.mrb[0].mxu0
    %935 = vmatprep.mubr.f32.mxu0 0.0
    %936 = vmatmul.mubr.f32.gmra.mrb[0].mxu0 %v358
    %v937 = vpop.f32.mrb[0].mxu0
    %v938 = vadd.f32 %v159, %v937
    %v939 = vpop.f32.mrb[0].mxu0
    %940 = vmatprep.mubr.f32.mxu0 0.0
    %941 = vmatmul.mubr.f32.gmra.mrb[0].mxu0 %v361
    %v942 = vpop.f32.mrb[0].mxu0
    %v943 = vadd.f32 %v159, %v942
    %v944 = vpop.f32.mrb[0].mxu0
    %945 = vmatprep.mubr.f32.mxu0 0.0
    %946 = vmatmul.mubr.f32.gmra.mrb[0].mxu0 %v364
    %v947 = vpop.f32.mrb[0].mxu0
    %v948 = vadd.f32 %v159, %v947
    %v949 = vpop.f32.mrb[0].mxu0
    %950 = vmatprep.mubr.f32.mxu0 0.0
    %951 = vmatmul.mubr.f32.gmra.mrb[0].mxu0 %v367
    %v952 = vpop.f32.mrb[0].mxu0
    %v953 = vadd.f32 %v159, %v952
    %v954 = vpop.f32.mrb[0].mxu0
    %955 = vmatprep.mubr.f32.mxu0 0.0
    %956 = vmatmul.mubr.f32.gmra.mrb[0].mxu0 %v370
    %v957 = vpop.f32.mrb[0].mxu0
    %v958 = vadd.f32 %v159, %v957
    %v959 = vpop.f32.mrb[0].mxu0
    %960 = vmatprep.mubr.f32.mxu0 0.0
    %961 = vmatmul.mubr.f32.gmra.mrb[0].mxu0 %v373
    %v962 = vpop.f32.mrb[0].mxu0
    %v963 = vadd.f32 %v159, %v962
    %v964 = vpop.f32.mrb[0].mxu0
    %965 = vmatprep.mubr.f32.mxu0 0.0
    %966 = vmatmul.mubr.f32.gmra.mrb[0].mxu0 %v376
    %v967 = vpop.f32.mrb[0].mxu0
    %v968 = vadd.f32 %v159, %v967
    %v969 = vpop.f32.mrb[0].mxu0
    %970 = vmatprep.mubr.f32.mxu0 0.0
    %971 = vmatmul.mubr.f32.gmra.mrb[0].mxu0 %v379
    %v972 = vpop.f32.mrb[0].mxu0
    %v973 = vadd.f32 %v159, %v972
    %v974 = vpop.f32.mrb[0].mxu0
    %975 = vmatprep.mubr.f32.mxu0 0.0
    %976 = vmatmul.mubr.f32.gmra.mrb[0].mxu0 %v382
    %v977 = vpop.f32.mrb[0].mxu0
    %v978 = vadd.f32 %v159, %v977
    %v979 = vpop.f32.mrb[0].mxu0
    %980 = vmatprep.mubr.f32.mxu0 0.0
    %981 = vmatmul.mubr.f32.gmra.mrb[0].mxu0 %v385
    %v982 = vpop.f32.mrb[0].mxu0
    %v983 = vadd.f32 %v159, %v982
    %v984 = vpop.f32.mrb[0].mxu0
    %985 = vmatprep.mubr.f32.mxu0 0.0
    %986 = vmatmul.mubr.f32.gmra.mrb[0].mxu0 %v388
    %v987 = vpop.f32.mrb[0].mxu0
    %v988 = vadd.f32 %v159, %v987
    %v989 = vpop.f32.mrb[0].mxu0
    %990 = vmatprep.mubr.f32.mxu0 0.0
    %991 = vmatmul.mubr.f32.gmra.mrb[0].mxu0 %v391
    %v992 = vpop.f32.mrb[0].mxu0
    %v993 = vadd.f32 %v159, %v992
    %v994 = vpop.f32.mrb[0].mxu0
    %995 = vmatprep.mubr.f32.mxu0 0.0
    %996 = vmatmul.mubr.f32.gmra.mrb[0].mxu0 %v394
    %v997 = vpop.f32.mrb[0].mxu0
    %v998 = vadd.f32 %v159, %v997
    %v999 = vpop.f32.mrb[0].mxu0
    %1000 = vmatprep.mubr.f32.mxu0 0.0
    %1001 = vmatmul.mubr.f32.gmra.mrb[0].mxu0 %v397
    %v1002 = vpop.f32.mrb[0].mxu0
    %v1003 = vadd.f32 %v159, %v1002
    %v1004 = vpop.f32.mrb[0].mxu0
    %1005 = vmatprep.mubr.f32.mxu0 0.0
    %1006 = vmatmul.mubr.f32.gmra.mrb[0].mxu0 %v400
    %v1007 = vpop.f32.mrb[0].mxu0
    %v1008 = vadd.f32 %v159, %v1007
    %v1009 = vpop.f32.mrb[0].mxu0
    %1010 = vmatprep.mubr.f32.mxu0 0.0
    %1011 = vmatmul.mubr.f32.gmra.mrb[0].mxu0 %v403
    %v1012 = vpop.f32.mrb[0].mxu0
    %v1013 = vadd.f32 %v159, %v1012
    %v1014 = vpop.f32.mrb[0].mxu0
    %1015 = vmatprep.mubr.f32.mxu0 0.0
    %1016 = vmatmul.mubr.f32.gmra.mrb[0].mxu0 %v406
    %v1017 = vpop.f32.mrb[0].mxu0
    %v1018 = vadd.f32 %v159, %v1017
    %v1019 = vpop.f32.mrb[0].mxu0
    %1020 = vmatprep.mubr.f32.mxu0 0.0
    %1021 = vmatmul.mubr.f32.gmra.mrb[0].mxu0 %v409
    %v1022 = vpop.f32.mrb[0].mxu0
    %v1023 = vadd.f32 %v159, %v1022
    %v1024 = vpop.f32.mrb[0].mxu0
    %1025 = vmatprep.mubr.f32.mxu0 0.0
    %1026 = vmatmul.mubr.f32.gmra.mrb[0].mxu0 %v412
    %v1027 = vpop.f32.mrb[0].mxu0
    %v1028 = vadd.f32 %v159, %v1027
    %v1029 = vpop.f32.mrb[0].mxu0
    %1030 = vmatprep.mubr.f32.mxu0 0.0
    %1031 = vmatmul.mubr.f32.gmra.mrb[0].mxu0 %v415
    %v1032 = vpop.f32.mrb[0].mxu0
    %v1033 = vadd.f32 %v159, %v1032
    %v1034 = vpop.f32.mrb[0].mxu0
    %1035 = vmatprep.mubr.f32.mxu0 0.0
    %1036 = vmatmul.mubr.f32.gmra.mrb[0].mxu0 %v418
    %v1037 = vpop.f32.mrb[0].mxu0
    %v1038 = vadd.f32 %v159, %v1037
    %v1039 = vpop.f32.mrb[0].mxu0
    %1040 = vmatprep.mubr.f32.mxu0 0.0
    %1041 = vmatmul.mubr.f32.gmra.mrb[0].mxu0 %v421
    %v1042 = vpop.f32.mrb[0].mxu0
    %v1043 = vadd.f32 %v159, %v1042
    %v1044 = vpop.f32.mrb[0].mxu0
    %1045 = vmatprep.mubr.f32.mxu0 0.0
    %1046 = vmatmul.mubr.f32.gmra.mrb[0].mxu0 %v424
    %v1047 = vpop.f32.mrb[0].mxu0
    %v1048 = vadd.f32 %v159, %v1047
    %v1049 = vpop.f32.mrb[0].mxu0
    %1050 = vmatprep.mubr.f32.mxu0 0.0
    %1051 = vmatmul.mubr.f32.gmra.mrb[0].mxu0 %v427
    %v1052 = vpop.f32.mrb[0].mxu0
    %v1053 = vadd.f32 %v159, %v1052
    %v1054 = vpop.f32.mrb[0].mxu0
    %1055 = vmatprep.mubr.f32.mxu0 0.0
    %1056 = vmatmul.mubr.f32.gmra.mrb[0].mxu0 %v430
    %v1057 = vpop.f32.mrb[0].mxu0
    %v1058 = vadd.f32 %v159, %v1057
    %v1059 = vpop.f32.mrb[0].mxu0
    %1060 = vmatprep.mubr.f32.mxu0 0.0
    %1061 = vmatmul.mubr.f32.gmra.mrb[0].mxu0 %v433
    %v1062 = vpop.f32.mrb[0].mxu0
    %v1063 = vadd.f32 %v159, %v1062
    %v1064 = vpop.f32.mrb[0].mxu0
    %1065 = vmatprep.mubr.f32.mxu0 0.0
    %1066 = vmatmul.mubr.f32.gmra.mrb[0].mxu0 %v436
    %v1067 = vpop.f32.mrb[0].mxu0
    %v1068 = vadd.f32 %v159, %v1067
    %v1069 = vpop.f32.mrb[0].mxu0
    %1070 = vmatprep.mubr.f32.mxu0 0.0
    %1071 = vmatmul.mubr.f32.gmra.mrb[0].mxu0 %v439
    %v1072 = vpop.f32.mrb[0].mxu0
    %v1073 = vadd.f32 %v159, %v1072
    %v1074 = vpop.f32.mrb[0].mxu0
    %1075 = vmatprep.mubr.f32.mxu0 0.0
    %1076 = vmatmul.mubr.f32.gmra.mrb[0].mxu0 %v442
    %v1077 = vpop.f32.mrb[0].mxu0
    %v1078 = vadd.f32 %v159, %v1077
    %v1079 = vpop.f32.mrb[0].mxu0
    %1080 = vmatprep.mubr.f32.mxu0 0.0
    %1081 = vmatmul.mubr.f32.gmra.mrb[0].mxu0 %v445
    %v1082 = vpop.f32.mrb[0].mxu0
    %v1083 = vadd.f32 %v159, %v1082
    %v1084 = vpop.f32.mrb[0].mxu0
    %1085 = vmatprep.mubr.f32.mxu0 0.0
    %1086 = vmatmul.mubr.f32.gmra.mrb[0].mxu0 %v448
    %v1087 = vpop.f32.mrb[0].mxu0
    %v1088 = vadd.f32 %v159, %v1087
    %v1089 = vpop.f32.mrb[0].mxu0
    %1090 = vmatprep.mubr.f32.mxu0 0.0
    %1091 = vmatmul.mubr.f32.gmra.mrb[0].mxu0 %v451
    %v1092 = vpop.f32.mrb[0].mxu0
    %v1093 = vadd.f32 %v159, %v1092
    %v1094 = vpop.f32.mrb[0].mxu0
    %1095 = vmatprep.mubr.f32.mxu0 0.0
    %1096 = vmatmul.mubr.f32.gmra.mrb[0].mxu0 %v454
    %v1097 = vpop.f32.mrb[0].mxu0
    %v1098 = vadd.f32 %v159, %v1097
    %v1099 = vpop.f32.mrb[0].mxu0
    %1100 = vmatprep.mubr.f32.mxu0 0.0
    %1101 = vmatmul.mubr.f32.gmra.mrb[0].mxu0 %v457
    %v1102 = vpop.f32.mrb[0].mxu0
    %v1103 = vadd.f32 %v159, %v1102
    %v1104 = vpop.f32.mrb[0].mxu0
    %1105 = vmatprep.mubr.f32.mxu0 0.0
    %1106 = vmatmul.mubr.f32.gmra.mrb[0].mxu0 %v460
    %v1107 = vpop.f32.mrb[0].mxu0
    %v1108 = vadd.f32 %v159, %v1107
    %v1109 = vpop.f32.mrb[0].mxu0
    %1110 = vmatprep.mubr.f32.mxu0 0.0
    %1111 = vmatmul.mubr.f32.gmra.mrb[0].mxu0 %v463
    %v1112 = vpop.f32.mrb[0].mxu0
    %v1113 = vadd.f32 %v159, %v1112
    %v1114 = vpop.f32.mrb[0].mxu0
    %1115 = vmatprep.mubr.f32.mxu0 0.0
    %1116 = vmatmul.mubr.f32.gmra.mrb[0].mxu0 %v466
    %v1117 = vpop.f32.mrb[0].mxu0
    %v1118 = vadd.f32 %v159, %v1117
    %v1119 = vpop.f32.mrb[0].mxu0
    %1120 = vmatprep.mubr.f32.mxu0 0.0
    %1121 = vmatmul.mubr.f32.gmra.mrb[0].mxu0 %v469
    %v1122 = vpop.f32.mrb[0].mxu0
    %v1123 = vadd.f32 %v159, %v1122
    %v1124 = vpop.f32.mrb[0].mxu0
    %1125 = vmatprep.mubr.f32.mxu0 0.0
    %1126 = vmatmul.mubr.f32.gmra.mrb[0].mxu0 %v472
    %v1127 = vpop.f32.mrb[0].mxu0
    %v1128 = vadd.f32 %v159, %v1127
    %v1129 = vpop.f32.mrb[0].mxu0
    %1130 = vmatprep.mubr.f32.mxu0 0.0
    %1131 = vmatmul.mubr.f32.gmra.mrb[0].mxu0 %v475
    %v1132 = vpop.f32.mrb[0].mxu0
    %v1133 = vadd.f32 %v159, %v1132
    %v1134 = vpop.f32.mrb[0].mxu0
    %1135 = vmatprep.mubr.f32.mxu0 0.0
    %1136 = vmatmul.mubr.f32.gmra.mrb[0].mxu0 %v478
    %v1137 = vpop.f32.mrb[0].mxu0
    %v1138 = vadd.f32 %v159, %v1137
    %v1139 = vpop.f32.mrb[0].mxu0
    %1140 = vmatprep.mubr.f32.mxu0 0.0
    %1141 = vmatmul.mubr.f32.gmra.mrb[0].mxu0 %v481
    %v1142 = vpop.f32.mrb[0].mxu0
    %v1143 = vadd.f32 %v159, %v1142
    %v1144 = vpop.f32.mrb[0].mxu0
    %1145 = vmatprep.mubr.f32.mxu0 0.0
    %1146 = vmatmul.mubr.f32.gmra.mrb[0].mxu0 %v484
    %v1147 = vpop.f32.mrb[0].mxu0
    %v1148 = vadd.f32 %v159, %v1147
    %v1149 = vpop.f32.mrb[0].mxu0
    %1150 = vmatprep.mubr.f32.mxu0 0.0
    %1151 = vmatmul.mubr.f32.gmra.mrb[0].mxu0 %v487
    %v1152 = vpop.f32.mrb[0].mxu0
    %v1153 = vadd.f32 %v159, %v1152
    %v1154 = vpop.f32.mrb[0].mxu0
    %1155 = vmatprep.mubr.f32.mxu0 0.0
    %1156 = vmatmul.mubr.f32.gmra.mrb[0].mxu0 %v490
    %v1157 = vpop.f32.mrb[0].mxu0
    %v1158 = vadd.f32 %v159, %v1157
    %v1159 = vpop.f32.mrb[0].mxu0
    %1160 = vmatprep.mubr.f32.mxu0 0.0
    %1161 = vmatmul.mubr.f32.gmra.mrb[0].mxu0 %v493
    %v1162 = vpop.f32.mrb[0].mxu0
    %v1163 = vadd.f32 %v159, %v1162
    %v1164 = vpop.f32.mrb[0].mxu0
    %1165 = vmatprep.mubr.f32.mxu0 0.0
    %1166 = vmatmul.mubr.f32.gmra.mrb[0].mxu0 %v496
    %v1167 = vpop.f32.mrb[0].mxu0
    %v1168 = vadd.f32 %v159, %v1167
    %v1169 = vpop.f32.mrb[0].mxu0
    %1170 = vmatprep.mubr.f32.mxu0 0.0
    %1171 = vmatmul.mubr.f32.gmra.mrb[0].mxu0 %v499
    %v1172 = vpop.f32.mrb[0].mxu0
    %v1173 = vadd.f32 %v159, %v1172
    %v1174 = vpop.f32.mrb[0].mxu0
    %1175 = vmatprep.mubr.f32.mxu0 0.0
    %1176 = vmatmul.mubr.f32.gmra.mrb[0].mxu0 %v502
    %v1177 = vpop.f32.mrb[0].mxu0
    %v1178 = vadd.f32 %v159, %v1177
    %v1179 = vpop.f32.mrb[0].mxu0
    %1180 = vmatprep.mubr.f32.mxu0 0.0
    %1181 = vmatmul.mubr.f32.gmra.mrb[0].mxu0 %v505
    %v1182 = vpop.f32.mrb[0].mxu0
    %v1183 = vadd.f32 %v159, %v1182
    %v1184 = vpop.f32.mrb[0].mxu0
    %1185 = vmatprep.mubr.f32.mxu0 0.0
    %1186 = vmatmul.mubr.f32.gmra.mrb[0].mxu0 %v508
    %v1187 = vpop.f32.mrb[0].mxu0
    %v1188 = vadd.f32 %v159, %v1187
    %v1189 = vpop.f32.mrb[0].mxu0
    %1190 = vmatprep.mubr.f32.mxu0 0.0
    %1191 = vmatmul.mubr.f32.gmra.mrb[0].mxu0 %v511
    %v1192 = vpop.f32.mrb[0].mxu0
    %v1193 = vadd.f32 %v159, %v1192
    %v1194 = vpop.f32.mrb[0].mxu0
    %1195 = vmatprep.mubr.f32.mxu0 0.0
    %1196 = vmatmul.mubr.f32.gmra.mrb[0].mxu0 %v514
    %v1197 = vpop.f32.mrb[0].mxu0
    %v1198 = vadd.f32 %v159, %v1197
    %v1199 = vpop.f32.mrb[0].mxu0
    %1200 = vmatprep.mubr.f32.mxu0 0.0
    %1201 = vmatmul.mubr.f32.gmra.mrb[0].mxu0 %v517
    %v1202 = vpop.f32.mrb[0].mxu0
    %v1203 = vadd.f32 %v159, %v1202
    %v1204 = vpop.f32.mrb[0].mxu0
    %1205 = vmatprep.mubr.f32.mxu0 0.0
    %1206 = vmatmul.mubr.f32.gmra.mrb[0].mxu0 %v520
    %v1207 = vpop.f32.mrb[0].mxu0
    %v1208 = vadd.f32 %v159, %v1207
    %v1209 = vpop.f32.mrb[0].mxu0
    %1210 = vmatprep.mubr.f32.mxu0 0.0
    %1211 = vmatmul.mubr.f32.gmra.mrb[0].mxu0 %v523
    %v1212 = vpop.f32.mrb[0].mxu0
    %v1213 = vadd.f32 %v159, %v1212
    %v1214 = vpop.f32.mrb[0].mxu0
    %1215 = vmatprep.mubr.f32.mxu0 0.0
    %1216 = vmatmul.mubr.f32.gmra.mrb[0].mxu0 %v526
    %v1217 = vpop.f32.mrb[0].mxu0
    %v1218 = vadd.f32 %v159, %v1217
    %v1219 = vpop.f32.mrb[0].mxu0
    %1220 = vmatprep.mubr.f32.mxu0 0.0
    %1221 = vmatmul.mubr.f32.gmra.mrb[0].mxu0 %v529
    %v1222 = vpop.f32.mrb[0].mxu0
    %v1223 = vadd.f32 %v159, %v1222
    %v1224 = vpop.f32.mrb[0].mxu0
    %1225 = vmatprep.mubr.f32.mxu0 0.0
    %1226 = vmatmul.mubr.f32.gmra.mrb[0].mxu0 %v532
    %v1227 = vpop.f32.mrb[0].mxu0
    %v1228 = vadd.f32 %v159, %v1227
    %v1229 = vpop.f32.mrb[0].mxu0
    %1230 = vmatprep.mubr.f32.mxu0 0.0
    %1231 = vmatmul.mubr.f32.gmra.mrb[0].mxu0 %v535
    %v1232 = vpop.f32.mrb[0].mxu0
    %v1233 = vadd.f32 %v159, %v1232
    %v1234 = vpop.f32.mrb[0].mxu0
    %1235 = vmatprep.mubr.f32.mxu0 0.0
    %1236 = vmatmul.mubr.f32.gmra.mrb[0].mxu0 %v538
    %v1237 = vpop.f32.mrb[0].mxu0
    %v1238 = vadd.f32 %v159, %v1237
    %v1239 = vpop.f32.mrb[0].mxu0
    %1240 = vmatprep.mubr.f32.mxu0 0.0
    %1241 = vmatmul.mubr.f32.gmra.mrb[0].mxu0 %v541
    %v1242 = vpop.f32.mrb[0].mxu0
    %v1243 = vadd.f32 %v159, %v1242
    %v1244 = vpop.f32.mrb[0].mxu0
    %1245 = vmatprep.mubr.f32.mxu0 0.0
    %1246 = vmatmul.mubr.f32.gmra.mrb[0].mxu0 %v544
    %v1247 = vpop.f32.mrb[0].mxu0
    %v1248 = vadd.f32 %v159, %v1247
    %v1249 = vpop.f32.mrb[0].mxu0
    %1250 = vdwg.mxu0
    %v1251 = vmax.f32 %v613, 0.0
    %v1252 = vmax.f32 %v618, 0.0
    %v1253 = vmax.f32 %v623, 0.0
    %v1254 = vmax.f32 %v628, 0.0
    %v1255 = vmax.f32 %v633, 0.0
    %v1256 = vmax.f32 %v638, 0.0
    %v1257 = vmax.f32 %v643, 0.0
    %v1258 = vmax.f32 %v648, 0.0
    %v1259 = vmax.f32 %v653, 0.0
    %v1260 = vmax.f32 %v658, 0.0
    %v1261 = vmax.f32 %v663, 0.0
    %v1262 = vmax.f32 %v668, 0.0
    %v1263 = vmax.f32 %v673, 0.0
    %v1264 = vmax.f32 %v678, 0.0
    %v1265 = vmax.f32 %v683, 0.0
    %v1266 = vmax.f32 %v688, 0.0
    %v1267 = vmax.f32 %v693, 0.0
    %v1268 = vmax.f32 %v698, 0.0
    %v1269 = vmax.f32 %v703, 0.0
    %v1270 = vmax.f32 %v708, 0.0
    %v1271 = vmax.f32 %v713, 0.0
    %v1272 = vmax.f32 %v718, 0.0
    %v1273 = vmax.f32 %v723, 0.0
    %v1274 = vmax.f32 %v728, 0.0
    %v1275 = vmax.f32 %v733, 0.0
    %v1276 = vmax.f32 %v738, 0.0
    %v1277 = vmax.f32 %v743, 0.0
    %v1278 = vmax.f32 %v748, 0.0
    %v1279 = vmax.f32 %v753, 0.0
    %v1280 = vmax.f32 %v758, 0.0
    %v1281 = vmax.f32 %v763, 0.0
    %v1282 = vmax.f32 %v768, 0.0
    %v1283 = vmax.f32 %v773, 0.0
    %v1284 = vmax.f32 %v778, 0.0
    %v1285 = vmax.f32 %v783, 0.0
    %v1286 = vmax.f32 %v788, 0.0
    %v1287 = vmax.f32 %v793, 0.0
    %v1288 = vmax.f32 %v798, 0.0
    %v1289 = vmax.f32 %v803, 0.0
    %v1290 = vmax.f32 %v808, 0.0
    %v1291 = vmax.f32 %v813, 0.0
    %v1292 = vmax.f32 %v818, 0.0
    %v1293 = vmax.f32 %v823, 0.0
    %v1294 = vmax.f32 %v828, 0.0
    %v1295 = vmax.f32 %v833, 0.0
    %v1296 = vmax.f32 %v838, 0.0
    %v1297 = vmax.f32 %v843, 0.0
    %v1298 = vmax.f32 %v848, 0.0
    %v1299 = vmax.f32 %v853, 0.0
    %v1300 = vmax.f32 %v858, 0.0
    %v1301 = vmax.f32 %v863, 0.0
    %v1302 = vmax.f32 %v868, 0.0
    %v1303 = vmax.f32 %v873, 0.0
    %v1304 = vmax.f32 %v878, 0.0
    %v1305 = vmax.f32 %v883, 0.0
    %v1306 = vmax.f32 %v888, 0.0
    %v1307 = vmax.f32 %v893, 0.0
    %v1308 = vmax.f32 %v898, 0.0
    %v1309 = vmax.f32 %v903, 0.0
    %v1310 = vmax.f32 %v908, 0.0
    %v1311 = vmax.f32 %v913, 0.0
    %v1312 = vmax.f32 %v918, 0.0
    %v1313 = vmax.f32 %v923, 0.0
    %v1314 = vmax.f32 %v928, 0.0
    %v1315 = vmax.f32 %v933, 0.0
    %v1316 = vmax.f32 %v938, 0.0
    %v1317 = vmax.f32 %v943, 0.0
    %v1318 = vmax.f32 %v948, 0.0
    %v1319 = vmax.f32 %v953, 0.0
    %v1320 = vmax.f32 %v958, 0.0
    %v1321 = vmax.f32 %v963, 0.0
    %v1322 = vmax.f32 %v968, 0.0
    %v1323 = vmax.f32 %v973, 0.0
    %v1324 = vmax.f32 %v978, 0.0
    %v1325 = vmax.f32 %v983, 0.0
    %v1326 = vmax.f32 %v988, 0.0
    %v1327 = vmax.f32 %v993, 0.0
    %v1328 = vmax.f32 %v998, 0.0
    %v1329 = vmax.f32 %v1003, 0.0
    %v1330 = vmax.f32 %v1008, 0.0
    %v1331 = vmax.f32 %v1013, 0.0
    %v1332 = vmax.f32 %v1018, 0.0
    %v1333 = vmax.f32 %v1023, 0.0
    %v1334 = vmax.f32 %v1028, 0.0
    %v1335 = vmax.f32 %v1033, 0.0
    %v1336 = vmax.f32 %v1038, 0.0
    %v1337 = vmax.f32 %v1043, 0.0
    %v1338 = vmax.f32 %v1048, 0.0
    %v1339 = vmax.f32 %v1053, 0.0
    %v1340 = vmax.f32 %v1058, 0.0
    %v1341 = vmax.f32 %v1063, 0.0
    %v1342 = vmax.f32 %v1068, 0.0
    %v1343 = vmax.f32 %v1073, 0.0
    %v1344 = vmax.f32 %v1078, 0.0
    %v1345 = vmax.f32 %v1083, 0.0
    %v1346 = vmax.f32 %v1088, 0.0
    %v1347 = vmax.f32 %v1093, 0.0
    %v1348 = vmax.f32 %v1098, 0.0
    %v1349 = vmax.f32 %v1103, 0.0
    %v1350 = vmax.f32 %v1108, 0.0
    %v1351 = vmax.f32 %v1113, 0.0
    %v1352 = vmax.f32 %v1118, 0.0
    %v1353 = vmax.f32 %v1123, 0.0
    %v1354 = vmax.f32 %v1128, 0.0
    %v1355 = vmax.f32 %v1133, 0.0
    %v1356 = vmax.f32 %v1138, 0.0
    %v1357 = vmax.f32 %v1143, 0.0
    %v1358 = vmax.f32 %v1148, 0.0
    %v1359 = vmax.f32 %v1153, 0.0
    %v1360 = vmax.f32 %v1158, 0.0
    %v1361 = vmax.f32 %v1163, 0.0
    %v1362 = vmax.f32 %v1168, 0.0
    %v1363 = vmax.f32 %v1173, 0.0
    %v1364 = vmax.f32 %v1178, 0.0
    %v1365 = vmax.f32 %v1183, 0.0
    %v1366 = vmax.f32 %v1188, 0.0
    %v1367 = vmax.f32 %v1193, 0.0
    %v1368 = vmax.f32 %v1198, 0.0
    %v1369 = vmax.f32 %v1203, 0.0
    %v1370 = vmax.f32 %v1208, 0.0
    %v1371 = vmax.f32 %v1213, 0.0
    %v1372 = vmax.f32 %v1218, 0.0
    %v1373 = vmax.f32 %v1223, 0.0
    %v1374 = vmax.f32 %v1228, 0.0
    %v1375 = vmax.f32 %v1233, 0.0
    %v1376 = vmax.f32 %v1238, 0.0
    %v1377 = vmax.f32 %v1243, 0.0
    %v1378 = vmax.f32 %v1248, 0.0
    %v1379 = vld [vmem:[%s3] sm:$0x1]
    %s1380 = sld [smem:[#allocation2]]
    %v1381 = vstv %s1380
    %1382 = vmatprep.subr.mxu0 0.0
    %1383 = vmatpush1.xpose.msra.mxu0 %v1251
    %1384 = vmatprep.subr.mxu0 0.0
    %1385 = vmatpush1.xpose.msra.mxu0 %v1252
    %1386 = vmatprep.subr.mxu0 0.0
    %1387 = vmatpush1.xpose.msra.mxu0 %v1253
    %1388 = vmatprep.subr.mxu0 0.0
    %1389 = vmatpush1.xpose.msra.mxu0 %v1254
    %1390 = vmatprep.subr.mxu0 0.0
    %1391 = vmatpush1.xpose.msra.mxu0 %v1255
    %1392 = vmatprep.subr.mxu0 0.0
    %1393 = vmatpush1.xpose.msra.mxu0 %v1256
    %1394 = vmatprep.subr.mxu0 0.0
    %1395 = vmatpush1.xpose.msra.mxu0 %v1257
    %1396 = vmatprep.subr.mxu0 0.0
    %1397 = vmatpush1.xpose.msra.mxu0 %v1258
    %1398 = vmatprep.subr.mxu0 0.0
    %1399 = vmatpush1.xpose.msra.mxu0 %v1259
    %1400 = vmatprep.subr.mxu0 0.0
    %1401 = vmatpush1.xpose.msra.mxu0 %v1260
    %1402 = vmatprep.subr.mxu0 0.0
    %1403 = vmatpush1.xpose.msra.mxu0 %v1261
    %1404 = vmatprep.subr.mxu0 0.0
    %1405 = vmatpush1.xpose.msra.mxu0 %v1262
    %1406 = vmatprep.subr.mxu0 0.0
    %1407 = vmatpush1.xpose.msra.mxu0 %v1263
    %1408 = vmatprep.subr.mxu0 0.0
    %1409 = vmatpush1.xpose.msra.mxu0 %v1264
    %1410 = vmatprep.subr.mxu0 0.0
    %1411 = vmatpush1.xpose.msra.mxu0 %v1265
    %1412 = vmatprep.subr.mxu0 0.0
    %1413 = vmatpush1.xpose.msra.mxu0 %v1266
    %1414 = vmatprep.subr.mxu0 0.0
    %1415 = vmatpush1.xpose.msra.mxu0 %v1267
    %1416 = vmatprep.subr.mxu0 0.0
    %1417 = vmatpush1.xpose.msra.mxu0 %v1268
    %1418 = vmatprep.subr.mxu0 0.0
    %1419 = vmatpush1.xpose.msra.mxu0 %v1269
    %1420 = vmatprep.subr.mxu0 0.0
    %1421 = vmatpush1.xpose.msra.mxu0 %v1270
    %1422 = vmatprep.subr.mxu0 0.0
    %1423 = vmatpush1.xpose.msra.mxu0 %v1271
    %1424 = vmatprep.subr.mxu0 0.0
    %1425 = vmatpush1.xpose.msra.mxu0 %v1272
    %1426 = vmatprep.subr.mxu0 0.0
    %1427 = vmatpush1.xpose.msra.mxu0 %v1273
    %1428 = vmatprep.subr.mxu0 0.0
    %1429 = vmatpush1.xpose.msra.mxu0 %v1274
    %1430 = vmatprep.subr.mxu0 0.0
    %1431 = vmatpush1.xpose.msra.mxu0 %v1275
    %1432 = vmatprep.subr.mxu0 0.0
    %1433 = vmatpush1.xpose.msra.mxu0 %v1276
    %1434 = vmatprep.subr.mxu0 0.0
    %1435 = vmatpush1.xpose.msra.mxu0 %v1277
    %1436 = vmatprep.subr.mxu0 0.0
    %1437 = vmatpush1.xpose.msra.mxu0 %v1278
    %1438 = vmatprep.subr.mxu0 0.0
    %1439 = vmatpush1.xpose.msra.mxu0 %v1279
    %1440 = vmatprep.subr.mxu0 0.0
    %1441 = vmatpush1.xpose.msra.mxu0 %v1280
    %1442 = vmatprep.subr.mxu0 0.0
    %1443 = vmatpush1.xpose.msra.mxu0 %v1281
    %1444 = vmatprep.subr.mxu0 0.0
    %1445 = vmatpush1.xpose.msra.mxu0 %v1282
    %1446 = vmatprep.mubr.f32.mxu0 0.0
    %1447 = vmatmul.mubr.f32.gmra.mrb[0].mxu0 %v1379
    %v1448 = vpop.f32.mrb[0].mxu0
    %v1449 = vadd.f32 %v1381, %v1448
    %v1450 = vpop.f32.mrb[0].mxu0
    %v1451 = vadd.f32 %v1381, %v1450
    %1452 = vdwg.mxu0
    %1453 = vmatprep.subr.mxu0 0.0
    %1454 = vmatpush1.xpose.msra.mxu0 %v1283
    %1455 = vmatprep.subr.mxu0 0.0
    %1456 = vmatpush1.xpose.msra.mxu0 %v1284
    %1457 = vmatprep.subr.mxu0 0.0
    %1458 = vmatpush1.xpose.msra.mxu0 %v1285
    %1459 = vmatprep.subr.mxu0 0.0
    %1460 = vmatpush1.xpose.msra.mxu0 %v1286
    %1461 = vmatprep.subr.mxu0 0.0
    %1462 = vmatpush1.xpose.msra.mxu0 %v1287
    %1463 = vmatprep.subr.mxu0 0.0
    %1464 = vmatpush1.xpose.msra.mxu0 %v1288
    %1465 = vmatprep.subr.mxu0 0.0
    %1466 = vmatpush1.xpose.msra.mxu0 %v1289
    %1467 = vmatprep.subr.mxu0 0.0
    %1468 = vmatpush1.xpose.msra.mxu0 %v1290
    %1469 = vmatprep.subr.mxu0 0.0
    %1470 = vmatpush1.xpose.msra.mxu0 %v1291
    %1471 = vmatprep.subr.mxu0 0.0
    %1472 = vmatpush1.xpose.msra.mxu0 %v1292
    %1473 = vmatprep.subr.mxu0 0.0
    %1474 = vmatpush1.xpose.msra.mxu0 %v1293
    %1475 = vmatprep.subr.mxu0 0.0
    %1476 = vmatpush1.xpose.msra.mxu0 %v1294
    %1477 = vmatprep.subr.mxu0 0.0
    %1478 = vmatpush1.xpose.msra.mxu0 %v1295
    %1479 = vmatprep.subr.mxu0 0.0
    %1480 = vmatpush1.xpose.msra.mxu0 %v1296
    %1481 = vmatprep.subr.mxu0 0.0
    %1482 = vmatpush1.xpose.msra.mxu0 %v1297
    %1483 = vmatprep.subr.mxu0 0.0
    %1484 = vmatpush1.xpose.msra.mxu0 %v1298
    %1485 = vmatprep.subr.mxu0 0.0
    %1486 = vmatpush1.xpose.msra.mxu0 %v1299
    %1487 = vmatprep.subr.mxu0 0.0
    %1488 = vmatpush1.xpose.msra.mxu0 %v1300
    %1489 = vmatprep.subr.mxu0 0.0
    %1490 = vmatpush1.xpose.msra.mxu0 %v1301
    %1491 = vmatprep.subr.mxu0 0.0
    %1492 = vmatpush1.xpose.msra.mxu0 %v1302
    %1493 = vmatprep.subr.mxu0 0.0
    %1494 = vmatpush1.xpose.msra.mxu0 %v1303
    %1495 = vmatprep.subr.mxu0 0.0
    %1496 = vmatpush1.xpose.msra.mxu0 %v1304
    %1497 = vmatprep.subr.mxu0 0.0
    %1498 = vmatpush1.xpose.msra.mxu0 %v1305
    %1499 = vmatprep.subr.mxu0 0.0
    %1500 = vmatpush1.xpose.msra.mxu0 %v1306
    %1501 = vmatprep.subr.mxu0 0.0
    %1502 = vmatpush1.xpose.msra.mxu0 %v1307
    %1503 = vmatprep.subr.mxu0 0.0
    %1504 = vmatpush1.xpose.msra.mxu0 %v1308
    %1505 = vmatprep.subr.mxu0 0.0
    %1506 = vmatpush1.xpose.msra.mxu0 %v1309
    %1507 = vmatprep.subr.mxu0 0.0
    %1508 = vmatpush1.xpose.msra.mxu0 %v1310
    %1509 = vmatprep.subr.mxu0 0.0
    %1510 = vmatpush1.xpose.msra.mxu0 %v1311
    %1511 = vmatprep.subr.mxu0 0.0
    %1512 = vmatpush1.xpose.msra.mxu0 %v1312
    %1513 = vmatprep.subr.mxu0 0.0
    %1514 = vmatpush1.xpose.msra.mxu0 %v1313
    %1515 = vmatprep.subr.mxu0 0.0
    %1516 = vmatpush1.xpose.msra.mxu0 %v1314
    %1517 = vmatprep.mubr.f32.mxu0 0.0
    %1518 = vmatmul.mubr.f32.gmra.mrb[0].mxu0 %v1379
    %v1519 = vpop.f32.mrb[0].mxu0
    %v1520 = vadd.f32 %v1381, %v1519
    %v1521 = vpop.f32.mrb[0].mxu0
    %v1522 = vadd.f32 %v1381, %v1521
    %1523 = vdwg.mxu0
    %1524 = vmatprep.subr.mxu0 0.0
    %1525 = vmatpush1.xpose.msra.mxu0 %v1315
    %1526 = vmatprep.subr.mxu0 0.0
    %1527 = vmatpush1.xpose.msra.mxu0 %v1316
    %1528 = vmatprep.subr.mxu0 0.0
    %1529 = vmatpush1.xpose.msra.mxu0 %v1317
    %1530 = vmatprep.subr.mxu0 0.0
    %1531 = vmatpush1.xpose.msra.mxu0 %v1318
    %1532 = vmatprep.subr.mxu0 0.0
    %1533 = vmatpush1.xpose.msra.mxu0 %v1319
    %1534 = vmatprep.subr.mxu0 0.0
    %1535 = vmatpush1.xpose.msra.mxu0 %v1320
    %1536 = vmatprep.subr.mxu0 0.0
    %1537 = vmatpush1.xpose.msra.mxu0 %v1321
    %1538 = vmatprep.subr.mxu0 0.0
    %1539 = vmatpush1.xpose.msra.mxu0 %v1322
    %1540 = vmatprep.subr.mxu0 0.0
    %1541 = vmatpush1.xpose.msra.mxu0 %v1323
    %1542 = vmatprep.subr.mxu0 0.0
    %1543 = vmatpush1.xpose.msra.mxu0 %v1324
    %1544 = vmatprep.subr.mxu0 0.0
    %1545 = vmatpush1.xpose.msra.mxu0 %v1325
    %1546 = vmatprep.subr.mxu0 0.0
    %1547 = vmatpush1.xpose.msra.mxu0 %v1326
    %1548 = vmatprep.subr.mxu0 0.0
    %1549 = vmatpush1.xpose.msra.mxu0 %v1327
    %1550 = vmatprep.subr.mxu0 0.0
    %1551 = vmatpush1.xpose.msra.mxu0 %v1328
    %1552 = vmatprep.subr.mxu0 0.0
    %1553 = vmatpush1.xpose.msra.mxu0 %v1329
    %1554 = vmatprep.subr.mxu0 0.0
    %1555 = vmatpush1.xpose.msra.mxu0 %v1330
    %1556 = vmatprep.subr.mxu0 0.0
    %1557 = vmatpush1.xpose.msra.mxu0 %v1331
    %1558 = vmatprep.subr.mxu0 0.0
    %1559 = vmatpush1.xpose.msra.mxu0 %v1332
    %1560 = vmatprep.subr.mxu0 0.0
    %1561 = vmatpush1.xpose.msra.mxu0 %v1333
    %1562 = vmatprep.subr.mxu0 0.0
    %1563 = vmatpush1.xpose.msra.mxu0 %v1334
    %1564 = vmatprep.subr.mxu0 0.0
    %1565 = vmatpush1.xpose.msra.mxu0 %v1335
    %1566 = vmatprep.subr.mxu0 0.0
    %1567 = vmatpush1.xpose.msra.mxu0 %v1336
    %1568 = vmatprep.subr.mxu0 0.0
    %1569 = vmatpush1.xpose.msra.mxu0 %v1337
    %1570 = vmatprep.subr.mxu0 0.0
    %1571 = vmatpush1.xpose.msra.mxu0 %v1338
    %1572 = vmatprep.subr.mxu0 0.0
    %1573 = vmatpush1.xpose.msra.mxu0 %v1339
    %1574 = vmatprep.subr.mxu0 0.0
    %1575 = vmatpush1.xpose.msra.mxu0 %v1340
    %1576 = vmatprep.subr.mxu0 0.0
    %1577 = vmatpush1.xpose.msra.mxu0 %v1341
    %1578 = vmatprep.subr.mxu0 0.0
    %1579 = vmatpush1.xpose.msra.mxu0 %v1342
    %1580 = vmatprep.subr.mxu0 0.0
    %1581 = vmatpush1.xpose.msra.mxu0 %v1343
    %1582 = vmatprep.subr.mxu0 0.0
    %1583 = vmatpush1.xpose.msra.mxu0 %v1344
    %1584 = vmatprep.subr.mxu0 0.0
    %1585 = vmatpush1.xpose.msra.mxu0 %v1345
    %1586 = vmatprep.subr.mxu0 0.0
    %1587 = vmatpush1.xpose.msra.mxu0 %v1346
    %1588 = vmatprep.mubr.f32.mxu0 0.0
    %1589 = vmatmul.mubr.f32.gmra.mrb[0].mxu0 %v1379
    %v1590 = vpop.f32.mrb[0].mxu0
    %v1591 = vadd.f32 %v1381, %v1590
    %v1592 = vpop.f32.mrb[0].mxu0
    %v1593 = vadd.f32 %v1381, %v1592
    %1594 = vdwg.mxu0
    %1595 = vmatprep.subr.mxu0 0.0
    %1596 = vmatpush1.xpose.msra.mxu0 %v1347
    %1597 = vmatprep.subr.mxu0 0.0
    %1598 = vmatpush1.xpose.msra.mxu0 %v1348
    %1599 = vmatprep.subr.mxu0 0.0
    %1600 = vmatpush1.xpose.msra.mxu0 %v1349
    %1601 = vmatprep.subr.mxu0 0.0
    %1602 = vmatpush1.xpose.msra.mxu0 %v1350
    %1603 = vmatprep.subr.mxu0 0.0
    %1604 = vmatpush1.xpose.msra.mxu0 %v1351
    %1605 = vmatprep.subr.mxu0 0.0
    %1606 = vmatpush1.xpose.msra.mxu0 %v1352
    %1607 = vmatprep.subr.mxu0 0.0
    %1608 = vmatpush1.xpose.msra.mxu0 %v1353
    %1609 = vmatprep.subr.mxu0 0.0
    %1610 = vmatpush1.xpose.msra.mxu0 %v1354
    %1611 = vmatprep.subr.mxu0 0.0
    %1612 = vmatpush1.xpose.msra.mxu0 %v1355
    %1613 = vmatprep.subr.mxu0 0.0
    %1614 = vmatpush1.xpose.msra.mxu0 %v1356
    %1615 = vmatprep.subr.mxu0 0.0
    %1616 = vmatpush1.xpose.msra.mxu0 %v1357
    %1617 = vmatprep.subr.mxu0 0.0
    %1618 = vmatpush1.xpose.msra.mxu0 %v1358
    %1619 = vmatprep.subr.mxu0 0.0
    %1620 = vmatpush1.xpose.msra.mxu0 %v1359
    %1621 = vmatprep.subr.mxu0 0.0
    %1622 = vmatpush1.xpose.msra.mxu0 %v1360
    %1623 = vmatprep.subr.mxu0 0.0
    %1624 = vmatpush1.xpose.msra.mxu0 %v1361
    %1625 = vmatprep.subr.mxu0 0.0
    %1626 = vmatpush1.xpose.msra.mxu0 %v1362
    %1627 = vmatprep.subr.mxu0 0.0
    %1628 = vmatpush1.xpose.msra.mxu0 %v1363
    %1629 = vmatprep.subr.mxu0 0.0
    %1630 = vmatpush1.xpose.msra.mxu0 %v1364
    %1631 = vmatprep.subr.mxu0 0.0
    %1632 = vmatpush1.xpose.msra.mxu0 %v1365
    %1633 = vmatprep.subr.mxu0 0.0
    %1634 = vmatpush1.xpose.msra.mxu0 %v1366
    %1635 = vmatprep.subr.mxu0 0.0
    %1636 = vmatpush1.xpose.msra.mxu0 %v1367
    %1637 = vmatprep.subr.mxu0 0.0
    %1638 = vmatpush1.xpose.msra.mxu0 %v1368
    %1639 = vmatprep.subr.mxu0 0.0
    %1640 = vmatpush1.xpose.msra.mxu0 %v1369
    %1641 = vmatprep.subr.mxu0 0.0
    %1642 = vmatpush1.xpose.msra.mxu0 %v1370
    %1643 = vmatprep.subr.mxu0 0.0
    %1644 = vmatpush1.xpose.msra.mxu0 %v1371
    %1645 = vmatprep.subr.mxu0 0.0
    %1646 = vmatpush1.xpose.msra.mxu0 %v1372
    %1647 = vmatprep.subr.mxu0 0.0
    %1648 = vmatpush1.xpose.msra.mxu0 %v1373
    %1649 = vmatprep.subr.mxu0 0.0
    %1650 = vmatpush1.xpose.msra.mxu0 %v1374
    %1651 = vmatprep.subr.mxu0 0.0
    %1652 = vmatpush1.xpose.msra.mxu0 %v1375
    %1653 = vmatprep.subr.mxu0 0.0
    %1654 = vmatpush1.xpose.msra.mxu0 %v1376
    %1655 = vmatprep.subr.mxu0 0.0
    %1656 = vmatpush1.xpose.msra.mxu0 %v1377
    %1657 = vmatprep.subr.mxu0 0.0
    %1658 = vmatpush1.xpose.msra.mxu0 %v1378
    %1659 = vmatprep.mubr.f32.mxu0 0.0
    %1660 = vmatmul.mubr.f32.gmra.mrb[0].mxu0 %v1379
    %v1661 = vpop.f32.mrb[0].mxu0
    %v1662 = vadd.f32 %v1381, %v1661
    %v1663 = vpop.f32.mrb[0].mxu0
    %v1664 = vadd.f32 %v1381, %v1663
    %1665 = vdwg.mxu0
    %v1674 = vcombine.low %v1449, %v1451
    %v1675 = vcombine.low %v1520, %v1522
    %v1676 = vcombine.low %v1591, %v1593
    %v1677 = vcombine.low %v1662, %v1664
    %v1679 = vunpack.c.l.s4 1966171168
    %v1680 = vunpack.c.0.s8 %v1679
    %v1681 = vlaneseq
    %v1682 = vshrl.u32 %v1681, 7
    %v1683 = vsub.s32 %v1680, %v1682
    %v1684 = vrot.slane %v1674, %v1683
    %v1686 = vunpack.c.l.s4 1966171168
    %v1687 = vunpack.c.0.s8 %v1686
    %v1688 = vlaneseq
    %v1689 = vshrl.u32 %v1688, 7
    %v1690 = vsub.s32 %v1687, %v1689
    %v1691 = vrot.slane %v1675, %v1690
    %v1693 = vunpack.c.l.s4 1966171168
    %v1694 = vunpack.c.0.s8 %v1693
    %v1695 = vlaneseq
    %v1696 = vshrl.u32 %v1695, 7
    %v1697 = vsub.s32 %v1694, %v1696
    %v1698 = vrot.slane %v1676, %v1697
    %v1700 = vunpack.c.l.s4 1966171168
    %v1701 = vunpack.c.0.s8 %v1700
    %v1702 = vlaneseq
    %v1703 = vshrl.u32 %v1702, 7
    %v1704 = vsub.s32 %v1701, %v1703
    %v1705 = vrot.slane %v1677, %v1704
    %v1706 = vcombine.low %v1684, %v1691
    %v1707 = vcombine.low %v1698, %v1705
    %v1709 = vunpack.c.l.s4 1966171168
    %v1710 = vunpack.c.0.s8 %v1709
    %v1711 = vlaneseq
    %v1712 = vshrl.u32 %v1711, 7
    %v1713 = vsub.s32 %v1710, %v1712
    %v1714 = vrot.slane %v1706, %v1713
    %v1716 = vunpack.c.l.s4 1966171168
    %v1717 = vunpack.c.0.s8 %v1716
    %v1718 = vlaneseq
    %v1719 = vshrl.u32 %v1718, 7
    %v1720 = vsub.s32 %v1717, %v1719
    %v1721 = vrot.slane %v1707, %v1720
    %v1722 = vcombine.low %v1714, %v1721
    %1724 = vst [vmem:[#allocation3] sm:$0xff] %v1722
    // Predicated region
    $region22: #{tpu_custom_call.1} parent=1 // pred_check
      _
    $region23: #{tpu_custom_call.1} parent=1 // pred_check_branch
      %1726 = sbr.rel (0) target = $region25
    $region24: #{tpu_custom_call.1} parent=1 // pred_region
      %s1728 = ssub.s32 128, 128
      %1729 = vsyncadd [#allocation4], %s1728
      %s1731 = sshll.u32 [#allocation3], 4
      %s1732 = int_to_ptr.vmem [resolvable:$true] %s1731
      %1734 = dma.vmem_to_hbm [thread:$0]  %s1732, 128, %s5, [#allocation4]
    $region25: #{tpu_custom_call.1} parent=1 // pred_fallthru
      _
    // Predicated region
    $region26: #{tpu_custom_call.1} parent=1 // pred_check
      _
    $region27: #{tpu_custom_call.1} parent=1 // pred_check_branch
      %1736 = sbr.rel (0) target = $region29
    $region28: #{tpu_custom_call.1} parent=1 // pred_region
      %1737 = dma.done [#allocation4], 128
    $region29: #{tpu_custom_call.1} parent=1 // pred_fallthru
      _
    %1738 = vsyncpa [#allocation4], 1

</llo_original>
